<compile_context>
chip_gen: v5e
topology: v5e:2x2
jax: 0.10.0
libtpu: 0.0.40
codegen_flags: <defaults>
</compile_context>

<pallas_src>
import functools
import math

import numpy as np

import jax
import jax.numpy as jnp
from jax import lax
from jax.experimental import pallas as pl
from jax.experimental.pallas import tpu as pltpu


def _attention_kernel(x_ref, tgt_ref, enc_a_ref, enc_b_ref,
                      w_in_ref, b_in_ref, w_out_ref, b_out_ref,
                      out_ref, attn_ref, *, mxu_dtype):
    bb, tt, C = x_ref.shape
    E = tgt_ref.shape[-1]
    rows = bb * tt
    half = jnp.float32(math.sqrt(0.5))
    is_f32 = np.dtype(mxu_dtype) == np.dtype(jnp.float32)
    # Full-precision MXU passes only for the f32 verification config.
    prec = lax.Precision.HIGHEST if is_f32 else None

    x = x_ref[...]                                             # (bb, tt, C) residual
    x2d = x.reshape(rows, C).astype(mxu_dtype)

    # x = (in_projection(x) + target_embedding) * sqrt(0.5)
    # shared weights -> one flattened (rows, C) @ (C, E) MXU matmul
    xp = jnp.dot(x2d, w_in_ref[...],
                 precision=prec, preferred_element_type=jnp.float32)
    xp = (xp.reshape(bb, tt, E) + b_in_ref[...]
          + tgt_ref[...].astype(jnp.float32)) * half           # (bb, tt, E) f32

    # scores = bmm(x, encoder_out[0]); enc_a is already mxu_dtype (host cast).
    scores = jnp.einsum('bte,bes->bts', xp.astype(mxu_dtype), enc_a_ref[...],
                        precision=prec, preferred_element_type=jnp.float32)

    # TODO(synk): encoder_padding_mask path (masked_fill(-inf) + per-row valid
    # length rescale) is not implemented; kernel covers encoder_padding_mask=None.

    # softmax over the source dimension
    m = jnp.max(scores, axis=-1, keepdims=True)
    e = jnp.exp(scores - m)
    denom = jnp.sum(e, axis=-1, keepdims=True)
    if is_f32:
        p = e / denom                                          # exact for verification
    else:
        p = e * pl.reciprocal(denom, approx=True)              # EUP slot

    p_mxu = p.astype(mxu_dtype)                 # single cast, reused for store + matmul
    if attn_ref.dtype == p_mxu.dtype:
        attn_ref[...] = p_mxu
    else:
        attn_ref[...] = p.astype(attn_ref.dtype)

    # context = bmm(attn, encoder_out[1]); enc_b is already mxu_dtype.  The
    # s*sqrt(1/s) scale and the final sqrt(0.5) are pre-folded into w_out/b_out.
    ctx = jnp.einsum('bts,bse->bte', p_mxu, enc_b_ref[...],
                     precision=prec, preferred_element_type=jnp.float32)

    out = jnp.dot(ctx.reshape(rows, E).astype(mxu_dtype), w_out_ref[...],
                  precision=prec, preferred_element_type=jnp.float32)
    out = out.reshape(bb, tt, C) + b_out_ref[...] + x.astype(jnp.float32) * half
    out_ref[...] = out.astype(out_ref.dtype)


def _vmem_info():
    """Return (vmem_limit_bytes, tile_budget_bytes, known_small_vmem)."""
    cap = None
    try:
        cap = int(pltpu.get_tpu_info().vmem_capacity_bytes)
    except Exception:
        cap = None
    known = cap is not None
    if cap is None:
        cap = 64 * 1024 * 1024                 # conservative (v7x per-TensorCore)
    # <= ~51 MiB on v7x (64 MiB physical, leave compiler scratch headroom);
    # ~100 MiB on v5e/v6e (128 MiB physical).
    limit = min(int(cap * 0.80), 100 * 1024 * 1024)
    budget = int(limit * 0.85)                 # headroom for uncounted temporaries
    small_vmem = known and cap <= 80 * 1024 * 1024
    return limit, budget, small_vmem


def _pick_blocks(B, T, C, E, S, *, x_bytes, tgt_bytes, enc_bytes, attn_bytes,
                 mxu_bytes, vmem_budget, tt_target=256):
    """Pick (block_b, block_t, enc_buffer_count).

    block_t is grown first (toward tt_target, multiple of 8 -- 16 preferred for
    bf16 blocks -- or == T) so the per-batch score/context matmuls fill the MXU
    M dimension; block_b is grown second for the shared projections.
    """
    def block_bytes(bb, tt, enc_buf):
        rows = bb * tt
        stream = (2 * bb * tt * C * x_bytes        # x in + out
                  + bb * tt * E * tgt_bytes        # target_embedding
                  + bb * tt * S * attn_bytes)      # attn writeback
        enc = 2 * bb * E * S * enc_bytes           # enc_a + enc_b (T-resident)
        weights = 2 * C * E * mxu_bytes + (C + E) * 4
        tmp = (rows * C * mxu_bytes                # x cast for the projection
               + 2 * rows * E * 4                  # xp / ctx (f32)
               + 3 * rows * S * 4                  # scores / exp / p (f32)
               + rows * S * mxu_bytes              # p cast for store + matmul
               + rows * C * 4)                     # f32 output before final cast
        # streamed blocks double-buffered; enc uses enc_buf buffers; weights
        # have a constant block index -> counted once.
        return 2 * stream + enc_buf * enc + weights + tmp

    sub = 16 if min(x_bytes, tgt_bytes, attn_bytes) < 4 else 8
    valid_tt = [d for d in range(1, T + 1)
                if T % d == 0 and (d % sub == 0 or d == T)]
    candidates = sorted((d for d in valid_tt if d <= tt_target), reverse=True)
    if not candidates:
        candidates = [min(valid_tt)]
    tt = candidates[-1]
    for d in candidates:
        if block_bytes(1, d, 2) <= vmem_budget:
            tt = d
            break

    # enc_a/enc_b only change block index on the (outer) batch axis; when there
    # are >= 2 inner T steps a single buffer is enough (exposed DMA amortized).
    enc_buf = 1 if (T // tt) >= 2 else 2

    bb = 1
    for d in sorted(d for d in range(1, B + 1) if B % d == 0):
        if block_bytes(d, tt, enc_buf) > vmem_budget:
            break
        bb = d

    # Keep >= 2 grid steps so both v7x TensorCores (megacore) get work.
    while (B // bb) * (T // tt) < 2:
        if bb > 1:
            bb = max(d for d in range(1, bb) if B % d == 0)
        else:
            smaller = [d for d in valid_tt if d < tt and d % 8 == 0]
            if not smaller:
                break
            tt = max(smaller)
            enc_buf = 1 if (T // tt) >= 2 else 2
    return bb, tt, enc_buf


def _spec(shape, index_map, buffer_count=None):
    """BlockSpec with optional explicit buffer count (graceful API fallback)."""
    if buffer_count is None:
        return pl.BlockSpec(shape, index_map)
    try:
        return pl.BlockSpec(shape, index_map,
                            pipeline_mode=pl.Buffered(buffer_count))
    except (AttributeError, TypeError):
        return pl.BlockSpec(shape, index_map)


def attention_layer(x, target_embedding, enc_a, enc_b, w_in, b_in, w_out, b_out,
                    *, mxu_dtype=jnp.bfloat16, attn_dtype=jnp.bfloat16,
                    block_b=None, block_t=None):
    """Fused ConvS2S attention forward (encoder_padding_mask=None path).

    x:                (B, T, C)   decoder conv features (residual)
    target_embedding: (B, T, E)
    enc_a:            (B, E, S)   encoder_out[0] (ready for bmm)
    enc_b:            (B, S, E)   encoder_out[1]
    w_in : (C, E), b_in : (E,)    in_projection  (torch weight (E,C) transposed)
    w_out: (E, C), b_out: (C,)    out_projection (torch weight (C,E) transposed)

    Returns (output (B,T,C) in x.dtype, attn_scores (B,T,S) in attn_dtype).
    """
    B, T, C = x.shape
    E = target_embedding.shape[-1]
    S = enc_a.shape[-1]

    vmem_limit, vmem_budget, small_vmem = _vmem_info()

    bb_auto, tt_auto, enc_buf = _pick_blocks(
        B, T, C, E, S,
        x_bytes=np.dtype(x.dtype).itemsize,
        tgt_bytes=np.dtype(mxu_dtype).itemsize,
        enc_bytes=np.dtype(mxu_dtype).itemsize,
        attn_bytes=np.dtype(attn_dtype).itemsize,
        mxu_bytes=np.dtype(mxu_dtype).itemsize,
        vmem_budget=vmem_budget)
    bb = block_b if block_b is not None else bb_auto
    tt = block_t if block_t is not None else tt_auto
    assert B % bb == 0 and T % tt == 0, (B, T, bb, tt)
    assert tt % 8 == 0 or tt == T, tt

    # One-time host-side prep:
    #  * fold the s*sqrt(1/s) context scale and the final sqrt(0.5) into the
    #    out projection;
    #  * cast weights AND the large streamed operands (enc_a, enc_b,
    #    target_embedding) to the MXU dtype so the kernel does no per-step
    #    VPU casts and bf16 halves their HBM->VMEM DMA bytes.
    half = math.sqrt(0.5)
    ctx_scale = S * math.sqrt(1.0 / S)            # == sqrt(S)
    w_in_eff = w_in.astype(mxu_dtype)
    w_out_eff = (w_out * (ctx_scale * half)).astype(mxu_dtype)
    b_in_eff = b_in.reshape(1, E).astype(jnp.float32)
    b_out_eff = (b_out * half).reshape(1, C).astype(jnp.float32)
    enc_a_eff = enc_a.astype(mxu_dtype)
    enc_b_eff = enc_b.astype(mxu_dtype)
    tgt_eff = target_embedding.astype(mxu_dtype)

    # enc / weight blocks only change index on the slow batch axis; on
    # small-VMEM chips (v7x, 64 MiB) single-buffer them to free VMEM for
    # larger T tiles.  On v5e/v6e keep the default double-buffering.
    res_buf = enc_buf if small_vmem else None
    wt_buf = 1 if small_vmem else None

    grid = (B // bb, T // tt)
    kernel = functools.partial(_attention_kernel, mxu_dtype=mxu_dtype)

    out, attn = pl.pallas_call(
        kernel,
        out_shape=(jax.ShapeDtypeStruct((B, T, C), x.dtype),
                   jax.ShapeDtypeStruct((B, T, S), attn_dtype)),
        grid_spec=pltpu.PrefetchScalarGridSpec(
            num_scalar_prefetch=0,
            grid=grid,
            in_specs=[
                pl.BlockSpec((bb, tt, C), lambda b, t: (b, t, 0)),    # x
                pl.BlockSpec((bb, tt, E), lambda b, t: (b, t, 0)),    # target_embedding
                _spec((bb, E, S), lambda b, t: (b, 0, 0), res_buf),   # enc_a (T-resident)
                _spec((bb, S, E), lambda b, t: (b, 0, 0), res_buf),   # enc_b (T-resident)
                _spec((C, E), lambda b, t: (0, 0), wt_buf),           # w_in
                _spec((1, E), lambda b, t: (0, 0), wt_buf),           # b_in
                _spec((E, C), lambda b, t: (0, 0), wt_buf),           # w_out (pre-scaled)
                _spec((1, C), lambda b, t: (0, 0), wt_buf),           # b_out (pre-scaled)
            ],
            out_specs=[
                pl.BlockSpec((bb, tt, C), lambda b, t: (b, t, 0)),    # output
                pl.BlockSpec((bb, tt, S), lambda b, t: (b, t, 0)),    # attn_scores
            ],
        ),
        compiler_params=pltpu.CompilerParams(
            dimension_semantics=("parallel", "parallel"),
            vmem_limit_bytes=vmem_limit),
    )(x, tgt_eff, enc_a_eff, enc_b_eff,
      w_in_eff, b_in_eff, w_out_eff, b_out_eff)
    return out, attn


def _reference(x, tgt, enc_a, enc_b, w_in, b_in, w_out, b_out):
    """Pure-JAX f32 reference matching the PyTorch module (mask=None path)."""
    hp = lax.Precision.HIGHEST
    half = math.sqrt(0.5)
    xp = (jnp.einsum('btc,ce->bte', x, w_in, precision=hp) + b_in + tgt) * half
    scores = jnp.einsum('bte,bes->bts', xp, enc_a, precision=hp)
    p = jax.nn.softmax(scores, axis=-1)
    ctx = jnp.einsum('bts,bse->bte', p, enc_b, precision=hp)
    s = enc_b.shape[1]
    ctx = ctx * (s * math.sqrt(1.0 / s))
    out = (jnp.einsum('bte,ec->btc', ctx, w_out, precision=hp) + b_out + x) * half
    return out, p


if __name__ == "__main__":
    # Small but MXU/lane-friendly shapes: S multiple of 128 keeps the attn
    # writeback lane-dense; B*T rows feed the shared projections.
    B, T, S = 4, 16, 128
    C, E = 64, 64          # conv_channels, embed_dim

    key = jax.random.PRNGKey(0)
    ks = jax.random.split(key, 8)
    x = jax.random.normal(ks[0], (B, T, C), dtype=jnp.float32)
    tgt = jax.random.normal(ks[1], (B, T, E), dtype=jnp.float32)
    enc_a = 0.25 * jax.random.normal(ks[2], (B, E, S), dtype=jnp.float32)
    enc_b = jax.random.normal(ks[3], (B, S, E), dtype=jnp.float32)

    # torch.nn.Linear weights are (out, in); pre-transposed here to (in, out).
    w_in = 0.1 * jax.random.normal(ks[4], (C, E), dtype=jnp.float32)
    b_in = 0.1 * jax.random.normal(ks[5], (E,), dtype=jnp.float32)
    w_out = 0.1 * jax.random.normal(ks[6], (E, C), dtype=jnp.float32)
    b_out = 0.1 * jax.random.normal(ks[7], (C,), dtype=jnp.float32)

    ref_out, ref_attn = _reference(x, tgt, enc_a, enc_b, w_in, b_in, w_out, b_out)

    # 1) f32 MXU config (exact softmax normalizer): verifies fused semantics.
    out32, attn32 = attention_layer(x, tgt, enc_a, enc_b, w_in, b_in, w_out, b_out,
                                    mxu_dtype=jnp.float32, attn_dtype=jnp.float32)
    out32, attn32 = jax.block_until_ready((out32, attn32))
    assert out32.shape == (B, T, C) and attn32.shape == (B, T, S)
    assert jnp.allclose(out32, ref_out, atol=1e-2, rtol=1e-2)
    assert jnp.allclose(attn32, ref_attn, atol=5e-3, rtol=5e-3)

    # 2) Performance config: bf16 MXU operands / enc / target / attn writeback.
    out16, attn16 = attention_layer(x, tgt, enc_a, enc_b, w_in, b_in, w_out, b_out)
    out16, attn16 = jax.block_until_ready((out16, attn16))
    assert out16.shape == (B, T, C) and attn16.shape == (B, T, S)
    assert jnp.allclose(out16.astype(jnp.float32), ref_out, atol=1e-1, rtol=1e-1)
    assert jnp.allclose(attn16.astype(jnp.float32), ref_attn, atol=5e-2, rtol=5e-2)

    print("KERNEL_OK")
</pallas_src>

<mosaic_0001>
module attributes {stable_mosaic.version = 11 : i64} {
  func.func @_attention_kernel(%arg0: i32, %arg1: i32, %arg2: memref<2x16x64xf32, #tpu.memory_space<vmem>>, %arg3: memref<2x16x64xf32, #tpu.memory_space<vmem>>, %arg4: memref<2x64x128xf32, #tpu.memory_space<vmem>>, %arg5: memref<2x128x64xf32, #tpu.memory_space<vmem>>, %arg6: memref<64x64xf32, #tpu.memory_space<vmem>>, %arg7: memref<1x64xf32, #tpu.memory_space<vmem>>, %arg8: memref<64x64xf32, #tpu.memory_space<vmem>>, %arg9: memref<1x64xf32, #tpu.memory_space<vmem>>, %arg10: memref<2x16x64xf32, #tpu.memory_space<vmem>>, %arg11: memref<2x16x128xf32, #tpu.memory_space<vmem>>) attributes {dimension_semantics = [#tpu.dimension_semantics<parallel>, #tpu.dimension_semantics<parallel>], iteration_bounds = array<i64: 2, 1>, scalar_prefetch = 0 : i64, scratch_operands = 0 : i64, tpu.core_type = #tpu.core_type<tc>, window_params = [{transform_indices = @transform_0, window_bounds = array<i64: 2, 16, 64>}, {transform_indices = @transform_1, window_bounds = array<i64: 2, 16, 64>}, {transform_indices = @transform_2, window_bounds = array<i64: 2, 64, 128>}, {transform_indices = @transform_3, window_bounds = array<i64: 2, 128, 64>}, {pipeline_mode = #tpu.pipeline_mode<synchronous>, transform_indices = @transform_4, window_bounds = array<i64: 64, 64>}, {pipeline_mode = #tpu.pipeline_mode<synchronous>, transform_indices = @transform_5, window_bounds = array<i64: 1, 64>}, {pipeline_mode = #tpu.pipeline_mode<synchronous>, transform_indices = @transform_6, window_bounds = array<i64: 64, 64>}, {pipeline_mode = #tpu.pipeline_mode<synchronous>, transform_indices = @transform_7, window_bounds = array<i64: 1, 64>}, {transform_indices = @transform_8, window_bounds = array<i64: 2, 16, 64>}, {transform_indices = @transform_9, window_bounds = array<i64: 2, 16, 128>}]} {
    %c0 = arith.constant 0 : index
    %c0_0 = arith.constant 0 : index
    %c0_1 = arith.constant 0 : index
    %0 = vector.load %arg2[%c0, %c0_0, %c0_1] : memref<2x16x64xf32, #tpu.memory_space<vmem>>, vector<2x16x64xf32>
    %1 = vector.shape_cast %0 : vector<2x16x64xf32> to vector<32x64xf32>
    %c0_2 = arith.constant 0 : index
    %c0_3 = arith.constant 0 : index
    %2 = vector.load %arg6[%c0_2, %c0_3] : memref<64x64xf32, #tpu.memory_space<vmem>>, vector<64x64xf32>
    %cst = arith.constant dense<0.000000e+00> : vector<32x64xf32>
    %3 = tpu.matmul %1, %2, %cst {dimension_numbers = #tpu.dot_dimension_numbers<[1], [0], [0], [1], [0, 0, 1, 1], [], []>, precision = #tpu.contract_precision<fp32>} : vector<32x64xf32>, vector<64x64xf32>, vector<32x64xf32> -> vector<32x64xf32>
    %4 = vector.shape_cast %3 : vector<32x64xf32> to vector<2x16x64xf32>
    %c0_4 = arith.constant 0 : index
    %c0_5 = arith.constant 0 : index
    %5 = vector.load %arg7[%c0_4, %c0_5] : memref<1x64xf32, #tpu.memory_space<vmem>>, vector<1x64xf32>
    %6 = vector.shape_cast %5 : vector<1x64xf32> to vector<1x1x64xf32>
    %7 = vector.broadcast %6 : vector<1x1x64xf32> to vector<2x16x64xf32>
    %8 = arith.addf %4, %7 : vector<2x16x64xf32>
    %c0_6 = arith.constant 0 : index
    %c0_7 = arith.constant 0 : index
    %c0_8 = arith.constant 0 : index
    %9 = vector.load %arg3[%c0_6, %c0_7, %c0_8] : memref<2x16x64xf32, #tpu.memory_space<vmem>>, vector<2x16x64xf32>
    %10 = arith.addf %8, %9 : vector<2x16x64xf32>
    %cst_9 = arith.constant 0.707106769 : f32
    %11 = vector.broadcast %cst_9 : f32 to vector<2x16x64xf32>
    %12 = arith.mulf %10, %11 : vector<2x16x64xf32>
    %c0_10 = arith.constant 0 : index
    %c0_11 = arith.constant 0 : index
    %c0_12 = arith.constant 0 : index
    %13 = vector.load %arg4[%c0_10, %c0_11, %c0_12] : memref<2x64x128xf32, #tpu.memory_space<vmem>>, vector<2x64x128xf32>
    "tpu.trace_start"() <{level = 10 : i32, message = "bte,bes->bts"}> : () -> ()
    %cst_13 = arith.constant dense<0.000000e+00> : vector<2x16x128xf32>
    %14 = tpu.matmul %12, %13, %cst_13 {dimension_numbers = #tpu.dot_dimension_numbers<[2], [1], [1], [2], [0, 0, 0, 1, 1, 2], [0], [0]>, precision = #tpu.contract_precision<fp32>} : vector<2x16x64xf32>, vector<2x64x128xf32>, vector<2x16x128xf32> -> vector<2x16x128xf32>
    "tpu.trace_stop"() : () -> ()
    %cst_14 = arith.constant dense<0xFF800000> : vector<2x16xf32>
    %15 = vector.multi_reduction <maximumf>, %14, %cst_14 [2] : vector<2x16x128xf32> to vector<2x16xf32>
    %16 = vector.shape_cast %15 : vector<2x16xf32> to vector<2x16x1xf32>
    %17 = vector.broadcast %16 : vector<2x16x1xf32> to vector<2x16x128xf32>
    %18 = arith.subf %14, %17 : vector<2x16x128xf32>
    %19 = math.exp %18 : vector<2x16x128xf32>
    %cst_15 = arith.constant dense<0.000000e+00> : vector<2x16xf32>
    %20 = vector.multi_reduction <add>, %19, %cst_15 [2] : vector<2x16x128xf32> to vector<2x16xf32>
    %21 = vector.shape_cast %20 : vector<2x16xf32> to vector<2x16x1xf32>
    %22 = vector.broadcast %21 : vector<2x16x1xf32> to vector<2x16x128xf32>
    %23 = arith.divf %19, %22 : vector<2x16x128xf32>
    %c0_16 = arith.constant 0 : index
    %c0_17 = arith.constant 0 : index
    %c0_18 = arith.constant 0 : index
    %24 = vector.load %arg11[%c0_16, %c0_17, %c0_18] : memref<2x16x128xf32, #tpu.memory_space<vmem>>, vector<2x16x128xf32>
    tpu.vector_store %arg11[%c0_16, %c0_17, %c0_18], %23 {strides = array<i32>} : memref<2x16x128xf32, #tpu.memory_space<vmem>>, vector<2x16x128xf32>,
    %c0_19 = arith.constant 0 : index
    %c0_20 = arith.constant 0 : index
    %c0_21 = arith.constant 0 : index
    %25 = vector.load %arg5[%c0_19, %c0_20, %c0_21] : memref<2x128x64xf32, #tpu.memory_space<vmem>>, vector<2x128x64xf32>
    "tpu.trace_start"() <{level = 10 : i32, message = "bts,bse->bte"}> : () -> ()
    %cst_22 = arith.constant dense<0.000000e+00> : vector<2x16x64xf32>
    %26 = tpu.matmul %23, %25, %cst_22 {dimension_numbers = #tpu.dot_dimension_numbers<[2], [1], [1], [2], [0, 0, 0, 1, 1, 2], [0], [0]>, precision = #tpu.contract_precision<fp32>} : vector<2x16x128xf32>, vector<2x128x64xf32>, vector<2x16x64xf32> -> vector<2x16x64xf32>
    "tpu.trace_stop"() : () -> ()
    %27 = vector.shape_cast %26 : vector<2x16x64xf32> to vector<32x64xf32>
    %c0_23 = arith.constant 0 : index
    %c0_24 = arith.constant 0 : index
    %28 = vector.load %arg8[%c0_23, %c0_24] : memref<64x64xf32, #tpu.memory_space<vmem>>, vector<64x64xf32>
    %cst_25 = arith.constant dense<0.000000e+00> : vector<32x64xf32>
    %29 = tpu.matmul %27, %28, %cst_25 {dimension_numbers = #tpu.dot_dimension_numbers<[1], [0], [0], [1], [0, 0, 1, 1], [], []>, precision = #tpu.contract_precision<fp32>} : vector<32x64xf32>, vector<64x64xf32>, vector<32x64xf32> -> vector<32x64xf32>
    %30 = vector.shape_cast %29 : vector<32x64xf32> to vector<2x16x64xf32>
    %c0_26 = arith.constant 0 : index
    %c0_27 = arith.constant 0 : index
    %31 = vector.load %arg9[%c0_26, %c0_27] : memref<1x64xf32, #tpu.memory_space<vmem>>, vector<1x64xf32>
    %32 = vector.shape_cast %31 : vector<1x64xf32> to vector<1x1x64xf32>
    %33 = vector.broadcast %32 : vector<1x1x64xf32> to vector<2x16x64xf32>
    %34 = arith.addf %30, %33 : vector<2x16x64xf32>
    %cst_28 = arith.constant 0.707106769 : f32
    %35 = vector.broadcast %cst_28 : f32 to vector<2x16x64xf32>
    %36 = arith.mulf %0, %35 : vector<2x16x64xf32>
    %37 = arith.addf %34, %36 : vector<2x16x64xf32>
    %c0_29 = arith.constant 0 : index
    %c0_30 = arith.constant 0 : index
    %c0_31 = arith.constant 0 : index
    %38 = vector.load %arg10[%c0_29, %c0_30, %c0_31] : memref<2x16x64xf32, #tpu.memory_space<vmem>>, vector<2x16x64xf32>
    tpu.vector_store %arg10[%c0_29, %c0_30, %c0_31], %37 {strides = array<i32>} : memref<2x16x64xf32, #tpu.memory_space<vmem>>, vector<2x16x64xf32>,
    return
  }
  func.func @transform_0(%arg0: i32, %arg1: i32) -> (i32, i32, i32) {
    %c0_i32 = arith.constant 0 : i32
    %c0_i32_0 = arith.constant 0 : i32
    return %arg0, %arg1, %c0_i32 : i32, i32, i32
  }
  func.func @transform_1(%arg0: i32, %arg1: i32) -> (i32, i32, i32) {
    %c0_i32 = arith.constant 0 : i32
    %c0_i32_0 = arith.constant 0 : i32
    return %arg0, %arg1, %c0_i32 : i32, i32, i32
  }
  func.func @transform_2(%arg0: i32, %arg1: i32) -> (i32, i32, i32) {
    %c0_i32 = arith.constant 0 : i32
    %c0_i32_0 = arith.constant 0 : i32
    %c0_i32_1 = arith.constant 0 : i32
    return %arg0, %c0_i32, %c0_i32_0 : i32, i32, i32
  }
  func.func @transform_3(%arg0: i32, %arg1: i32) -> (i32, i32, i32) {
    %c0_i32 = arith.constant 0 : i32
    %c0_i32_0 = arith.constant 0 : i32
    %c0_i32_1 = arith.constant 0 : i32
    return %arg0, %c0_i32, %c0_i32_0 : i32, i32, i32
  }
  func.func @transform_4(%arg0: i32, %arg1: i32) -> (i32, i32) {
    %c0_i32 = arith.constant 0 : i32
    %c0_i32_0 = arith.constant 0 : i32
    %c0_i32_1 = arith.constant 0 : i32
    return %c0_i32, %c0_i32_0 : i32, i32
  }
  func.func @transform_5(%arg0: i32, %arg1: i32) -> (i32, i32) {
    %c0_i32 = arith.constant 0 : i32
    %c0_i32_0 = arith.constant 0 : i32
    %c0_i32_1 = arith.constant 0 : i32
    return %c0_i32, %c0_i32_0 : i32, i32
  }
  func.func @transform_6(%arg0: i32, %arg1: i32) -> (i32, i32) {
    %c0_i32 = arith.constant 0 : i32
    %c0_i32_0 = arith.constant 0 : i32
    %c0_i32_1 = arith.constant 0 : i32
    return %c0_i32, %c0_i32_0 : i32, i32
  }
  func.func @transform_7(%arg0: i32, %arg1: i32) -> (i32, i32) {
    %c0_i32 = arith.constant 0 : i32
    %c0_i32_0 = arith.constant 0 : i32
    %c0_i32_1 = arith.constant 0 : i32
    return %c0_i32, %c0_i32_0 : i32, i32
  }
  func.func @transform_8(%arg0: i32, %arg1: i32) -> (i32, i32, i32) {
    %c0_i32 = arith.constant 0 : i32
    %c0_i32_0 = arith.constant 0 : i32
    return %arg0, %arg1, %c0_i32 : i32, i32, i32
  }
  func.func @transform_9(%arg0: i32, %arg1: i32) -> (i32, i32, i32) {
    %c0_i32 = arith.constant 0 : i32
    %c0_i32_0 = arith.constant 0 : i32
    return %arg0, %arg1, %c0_i32 : i32, i32, i32
  }
}

</mosaic_0001>

<llo_original>
// kernel: tpu_custom_call.1
$region0: #{tpu_custom_call.1}
  #allocation0 [shape = 'u32[]', space=smem, size = 0x4, offset = 0x4, fixed_abs, tag = 'smem constant byte address 0x4 - core index']
  #allocation1 [shape = 'u32[72,128]{1,0:T(1,128)}', space=vmem, size = 0x9000, scoped, tag = 'internal scratch']
  %s0 = inlined_call_operand.vmem [shape: f32[4,16,64], index: 0, kind: input, shape index: {}]
  %s1 = inlined_call_operand.vmem [shape: f32[4,16,64], index: 1, kind: input, shape index: {}]
  %s2 = inlined_call_operand.vmem [shape: f32[4,64,128], index: 2, kind: input, shape index: {}]
  %s3 = inlined_call_operand.vmem [shape: f32[4,128,64], index: 3, kind: input, shape index: {}]
  %s4 = inlined_call_operand.vmem [shape: f32[64,64], index: 4, kind: input, shape index: {}]
  %s5 = inlined_call_operand.vmem [shape: f32[1,64], index: 5, kind: input, shape index: {}]
  %s6 = inlined_call_operand.vmem [shape: f32[64,64], index: 6, kind: input, shape index: {}]
  %s7 = inlined_call_operand.vmem [shape: f32[1,64], index: 7, kind: input, shape index: {}]
  %s8 = inlined_call_operand.hbm [shape: f32[4,16,64], index: 8, kind: output, shape index: {0}]
  %s9 = inlined_call_operand.hbm [shape: f32[4,16,128], index: 9, kind: output, shape index: {1}]
  %10 = xla_tuple %s8, %s9
  %s11 = sld [smem:[#allocation0]]
  $region73: #{tpu_custom_call.1} parent=0
    _
  %s13 = ssub.s32 1, %s11
  %s14 = scalar_select 0, %s13, %s11
  $region1: #{tpu_custom_call.1} parent=0
    #allocation2 [shape = 'u8[32768]{0}', space=vmem, size = 0x8000, scoped, tag = 'output window, operand 0']
    #allocation3 [shape = 's32[2]{0}', space=sflag, size = 0x8, scoped, tag = 'scoped memory for tpu_custom_call.1']
    #allocation4 [shape = 'u8[32768]{0}', space=vmem, size = 0x8000, scoped, tag = 'output window, operand 1']
    #allocation5 [shape = 's32[2]{0}', space=sflag, size = 0x8, scoped, tag = 'scoped memory for tpu_custom_call.1']
    %15 = vsyncpa [#allocation3], 0
    %s16 = scalar_lea.sflag [#allocation3], 1
    %17 = vsyncpa %s16, 0
    %18 = vsyncpa [#allocation5], 0
    %s19 = scalar_lea.sflag [#allocation5], 1
    %20 = vsyncpa %s19, 0
    loop: start=0, step=1, limit=4
    $region2: #{tpu_custom_call.1} parent=1 // loop_pre_header
      _
    $region3: #{tpu_custom_call.1} parent=1 // loop_header
      %s22 = sphi 0, %s26
      %p23 = scmp.ge.s32.totalorder %s22, 4
      %s29 = sphi 0, %s41
      %s30 = sphi 0, %s37
      %s31 = sphi 0, %s29
      %s32 = sphi 0, %s30
      %s33 = sphi 0, %s31
      %s34 = sphi 0, %s32
      %s46 = sphi 0, %s48
      %s49 = sphi 0, %s46
      %s50 = sphi 0, %s49
      %s66 = sphi 0, %s50
      %s74 = sphi 0, %s76
      %s77 = sphi 0, %s74
      %s78 = sphi 0, %s77
      %s94 = sphi 0, %s78
      %s100 = sphi 0, %s102
      %s103 = sphi 0, %s100
      %s104 = sphi 0, %s103
      %s120 = sphi 0, %s104
      %s126 = sphi 0, %s128
      %s129 = sphi 0, %s126
      %s130 = sphi 0, %s129
      %s146 = sphi 0, %s130
      %s150 = sphi 0, %s150
      %s152 = sphi 0, %s150
      %s153 = sphi 0, %s152
      %s167 = sphi 0, %s153
      %s171 = sphi 0, %s171
      %s173 = sphi 0, %s171
      %s174 = sphi 0, %s173
      %s188 = sphi 0, %s174
      %s192 = sphi 0, %s192
      %s194 = sphi 0, %s192
      %s195 = sphi 0, %s194
      %s209 = sphi 0, %s195
      %s213 = sphi 0, %s213
      %s215 = sphi 0, %s213
      %s216 = sphi 0, %s215
      %s230 = sphi 0, %s216
      %s238 = sphi 0, %s240
      %s241 = sphi 0, %s238
      %s242 = sphi 0, %s241
      %s258 = sphi 0, %s242
      %s266 = sphi 0, %s268
      %s269 = sphi 0, %s266
      %s270 = sphi 0, %s269
      %s286 = sphi 0, %s270
    $region4: #{tpu_custom_call.1} parent=1 // loop_header_branch
      %25 = sbr.rel (%p23) target = $region8
    $region5: #{tpu_custom_call.1} parent=1 // loop_body
      %s27 = ssub.s32 %s22, 1
      %s28 = ssub.s32 %s22, 2
      %s35 = sadd.s32 1, %s30
      %p36 = scmp.ge.s32.totalorder %s35, 1
      %s37 = scalar_select %p36, 0, %s35
      %s38 = sadd.s32 1, %s29
      %s39 = scalar_select %p36, %s38, %s29
      %p40 = scmp.ge.s32.totalorder %s39, 2
      %s41 = scalar_select %p40, 0, %s39
      %s42 = ssub.s32 %s29, %s41
      %s43 = ssub.s32 %s30, %s37
      %s44 = sor.u32 %s42, %s43
      %p45 = scmp.eq.s32.totalorder %s44, 0
      %s47 = sadd.s32 %s46, 1
      %s48 = scalar_select %p45, %s46, %s47
      %p51 = pneg %p45
      %p52 = scmp.eq.s32.totalorder %s22, 1
      %p53 = por %p51, %p52
      %p54 = scmp.ne.s32.totalorder %s46, %s49
      %p55 = scmp.eq.s32.totalorder %s22, 0
      %p56 = por %p54, %p55
      %p57 = scmp.ne.s32.totalorder %s46, %s49
      %p58 = scmp.eq.s32.totalorder %s27, 1
      %p59 = por %p57, %p58
      %p60 = scmp.ne.s32.totalorder %s49, %s50
      %p61 = scmp.eq.s32.totalorder %s27, 0
      %p62 = por %p60, %p61
      %p63 = scmp.ne.s32.totalorder %s49, %s50
      %p64 = scmp.eq.s32.totalorder %s28, 1
      %p65 = por %p63, %p64
      %p67 = scmp.ne.s32.totalorder %s50, %s66
      %p68 = scmp.eq.s32.totalorder %s28, 0
      %p69 = por %p67, %p68
      %s70 = ssub.s32 %s29, %s41
      %s71 = ssub.s32 %s30, %s37
      %s72 = sor.u32 %s70, %s71
      %p73 = scmp.eq.s32.totalorder %s72, 0
      %s75 = sadd.s32 %s74, 1
      %s76 = scalar_select %p73, %s74, %s75
      %p79 = pneg %p73
      %p80 = scmp.eq.s32.totalorder %s22, 1
      %p81 = por %p79, %p80
      %p82 = scmp.ne.s32.totalorder %s74, %s77
      %p83 = scmp.eq.s32.totalorder %s22, 0
      %p84 = por %p82, %p83
      %p85 = scmp.ne.s32.totalorder %s74, %s77
      %p86 = scmp.eq.s32.totalorder %s27, 1
      %p87 = por %p85, %p86
      %p88 = scmp.ne.s32.totalorder %s77, %s78
      %p89 = scmp.eq.s32.totalorder %s27, 0
      %p90 = por %p88, %p89
      %p91 = scmp.ne.s32.totalorder %s77, %s78
      %p92 = scmp.eq.s32.totalorder %s28, 1
      %p93 = por %p91, %p92
      %p95 = scmp.ne.s32.totalorder %s78, %s94
      %p96 = scmp.eq.s32.totalorder %s28, 0
      %p97 = por %p95, %p96
      %s98 = ssub.s32 %s29, %s41
      %p99 = scmp.eq.s32.totalorder %s98, 0
      %s101 = sadd.s32 %s100, 1
      %s102 = scalar_select %p99, %s100, %s101
      %p105 = pneg %p99
      %p106 = scmp.eq.s32.totalorder %s22, 1
      %p107 = por %p105, %p106
      %p108 = scmp.ne.s32.totalorder %s100, %s103
      %p109 = scmp.eq.s32.totalorder %s22, 0
      %p110 = por %p108, %p109
      %p111 = scmp.ne.s32.totalorder %s100, %s103
      %p112 = scmp.eq.s32.totalorder %s27, 1
      %p113 = por %p111, %p112
      %p114 = scmp.ne.s32.totalorder %s103, %s104
      %p115 = scmp.eq.s32.totalorder %s27, 0
      %p116 = por %p114, %p115
      %p117 = scmp.ne.s32.totalorder %s103, %s104
      %p118 = scmp.eq.s32.totalorder %s28, 1
      %p119 = por %p117, %p118
      %p121 = scmp.ne.s32.totalorder %s104, %s120
      %p122 = scmp.eq.s32.totalorder %s28, 0
      %p123 = por %p121, %p122
      %s124 = ssub.s32 %s29, %s41
      %p125 = scmp.eq.s32.totalorder %s124, 0
      %s127 = sadd.s32 %s126, 1
      %s128 = scalar_select %p125, %s126, %s127
      %p131 = pneg %p125
      %p132 = scmp.eq.s32.totalorder %s22, 1
      %p133 = por %p131, %p132
      %p134 = scmp.ne.s32.totalorder %s126, %s129
      %p135 = scmp.eq.s32.totalorder %s22, 0
      %p136 = por %p134, %p135
      %p137 = scmp.ne.s32.totalorder %s126, %s129
      %p138 = scmp.eq.s32.totalorder %s27, 1
      %p139 = por %p137, %p138
      %p140 = scmp.ne.s32.totalorder %s129, %s130
      %p141 = scmp.eq.s32.totalorder %s27, 0
      %p142 = por %p140, %p141
      %p143 = scmp.ne.s32.totalorder %s129, %s130
      %p144 = scmp.eq.s32.totalorder %s28, 1
      %p145 = por %p143, %p144
      %p147 = scmp.ne.s32.totalorder %s130, %s146
      %p148 = scmp.eq.s32.totalorder %s28, 0
      %p149 = por %p147, %p148
      %s151 = sadd.s32 %s150, 1
      %p154 = scmp.eq.s32.totalorder %s22, 1
      %p155 = scmp.ne.s32.totalorder %s150, %s152
      %p156 = scmp.eq.s32.totalorder %s22, 0
      %p157 = por %p155, %p156
      %p158 = scmp.ne.s32.totalorder %s150, %s152
      %p159 = scmp.eq.s32.totalorder %s27, 1
      %p160 = por %p158, %p159
      %p161 = scmp.ne.s32.totalorder %s152, %s153
      %p162 = scmp.eq.s32.totalorder %s27, 0
      %p163 = por %p161, %p162
      %p164 = scmp.ne.s32.totalorder %s152, %s153
      %p165 = scmp.eq.s32.totalorder %s28, 1
      %p166 = por %p164, %p165
      %p168 = scmp.ne.s32.totalorder %s153, %s167
      %p169 = scmp.eq.s32.totalorder %s28, 0
      %p170 = por %p168, %p169
      %s172 = sadd.s32 %s171, 1
      %p175 = scmp.eq.s32.totalorder %s22, 1
      %p176 = scmp.ne.s32.totalorder %s171, %s173
      %p177 = scmp.eq.s32.totalorder %s22, 0
      %p178 = por %p176, %p177
      %p179 = scmp.ne.s32.totalorder %s171, %s173
      %p180 = scmp.eq.s32.totalorder %s27, 1
      %p181 = por %p179, %p180
      %p182 = scmp.ne.s32.totalorder %s173, %s174
      %p183 = scmp.eq.s32.totalorder %s27, 0
      %p184 = por %p182, %p183
      %p185 = scmp.ne.s32.totalorder %s173, %s174
      %p186 = scmp.eq.s32.totalorder %s28, 1
      %p187 = por %p185, %p186
      %p189 = scmp.ne.s32.totalorder %s174, %s188
      %p190 = scmp.eq.s32.totalorder %s28, 0
      %p191 = por %p189, %p190
      %s193 = sadd.s32 %s192, 1
      %p196 = scmp.eq.s32.totalorder %s22, 1
      %p197 = scmp.ne.s32.totalorder %s192, %s194
      %p198 = scmp.eq.s32.totalorder %s22, 0
      %p199 = por %p197, %p198
      %p200 = scmp.ne.s32.totalorder %s192, %s194
      %p201 = scmp.eq.s32.totalorder %s27, 1
      %p202 = por %p200, %p201
      %p203 = scmp.ne.s32.totalorder %s194, %s195
      %p204 = scmp.eq.s32.totalorder %s27, 0
      %p205 = por %p203, %p204
      %p206 = scmp.ne.s32.totalorder %s194, %s195
      %p207 = scmp.eq.s32.totalorder %s28, 1
      %p208 = por %p206, %p207
      %p210 = scmp.ne.s32.totalorder %s195, %s209
      %p211 = scmp.eq.s32.totalorder %s28, 0
      %p212 = por %p210, %p211
      %s214 = sadd.s32 %s213, 1
      %p217 = scmp.eq.s32.totalorder %s22, 1
      %p218 = scmp.ne.s32.totalorder %s213, %s215
      %p219 = scmp.eq.s32.totalorder %s22, 0
      %p220 = por %p218, %p219
      %p221 = scmp.ne.s32.totalorder %s213, %s215
      %p222 = scmp.eq.s32.totalorder %s27, 1
      %p223 = por %p221, %p222
      %p224 = scmp.ne.s32.totalorder %s215, %s216
      %p225 = scmp.eq.s32.totalorder %s27, 0
      %p226 = por %p224, %p225
      %p227 = scmp.ne.s32.totalorder %s215, %s216
      %p228 = scmp.eq.s32.totalorder %s28, 1
      %p229 = por %p227, %p228
      %p231 = scmp.ne.s32.totalorder %s216, %s230
      %p232 = scmp.eq.s32.totalorder %s28, 0
      %p233 = por %p231, %p232
      %s234 = ssub.s32 %s29, %s41
      %s235 = ssub.s32 %s30, %s37
      %s236 = sor.u32 %s234, %s235
      %p237 = scmp.eq.s32.totalorder %s236, 0
      %s239 = sadd.s32 %s238, 1
      %s240 = scalar_select %p237, %s238, %s239
      %p243 = pneg %p237
      %p244 = scmp.eq.s32.totalorder %s22, 1
      %p245 = por %p243, %p244
      %p246 = scmp.ne.s32.totalorder %s238, %s241
      %p247 = scmp.eq.s32.totalorder %s22, 0
      %p248 = por %p246, %p247
      %p249 = scmp.ne.s32.totalorder %s238, %s241
      %p250 = scmp.eq.s32.totalorder %s27, 1
      %p251 = por %p249, %p250
      %p252 = scmp.ne.s32.totalorder %s241, %s242
      %p253 = scmp.eq.s32.totalorder %s27, 0
      %p254 = por %p252, %p253
      %p255 = scmp.ne.s32.totalorder %s241, %s242
      %p256 = scmp.eq.s32.totalorder %s28, 1
      %p257 = por %p255, %p256
      %p259 = scmp.ne.s32.totalorder %s242, %s258
      %p260 = scmp.eq.s32.totalorder %s28, 0
      %p261 = por %p259, %p260
      %s262 = ssub.s32 %s29, %s41
      %s263 = ssub.s32 %s30, %s37
      %s264 = sor.u32 %s262, %s263
      %p265 = scmp.eq.s32.totalorder %s264, 0
      %s267 = sadd.s32 %s266, 1
      %s268 = scalar_select %p265, %s266, %s267
      %p271 = pneg %p265
      %p272 = scmp.eq.s32.totalorder %s22, 1
      %p273 = por %p271, %p272
      %p274 = scmp.ne.s32.totalorder %s266, %s269
      %p275 = scmp.eq.s32.totalorder %s22, 0
      %p276 = por %p274, %p275
      %p277 = scmp.ne.s32.totalorder %s266, %s269
      %p278 = scmp.eq.s32.totalorder %s27, 1
      %p279 = por %p277, %p278
      %p280 = scmp.ne.s32.totalorder %s269, %s270
      %p281 = scmp.eq.s32.totalorder %s27, 0
      %p282 = por %p280, %p281
      %p283 = scmp.ne.s32.totalorder %s269, %s270
      %p284 = scmp.eq.s32.totalorder %s28, 1
      %p285 = por %p283, %p284
      %p287 = scmp.ne.s32.totalorder %s270, %s286
      %p288 = scmp.eq.s32.totalorder %s28, 0
      %p289 = por %p287, %p288
      %p290 = scmp.le.s32.totalorder 1, %s22
      %p291 = scmp.lt.s32.totalorder %s22, 3
      %p292 = pnand %p290, %p291
      %p293 = pneg %p292
      // Predicated region
      $region9: #{tpu_custom_call.1} parent=5 // pred_check
        _
      $region10: #{tpu_custom_call.1} parent=5 // pred_check_branch
        %295 = sbr.rel (%p292) target = $region12
      $region11: #{tpu_custom_call.1} parent=5 // pred_region
        %s296 = ssub.s32 %s22, 1
        // Predicated region
        $region13: #{tpu_custom_call.1} parent=11 // pred_check
          %p297 = pneg %p163
        $region14: #{tpu_custom_call.1} parent=11 // pred_check_branch
          %299 = sbr.rel (%p297) target = $region16
        $region15: #{tpu_custom_call.1} parent=11 // pred_region
          _
        $region16: #{tpu_custom_call.1} parent=11 // pred_fallthru
          _
        // Predicated region
        $region17: #{tpu_custom_call.1} parent=11 // pred_check
          %p300 = pneg %p184
        $region18: #{tpu_custom_call.1} parent=11 // pred_check_branch
          %302 = sbr.rel (%p300) target = $region20
        $region19: #{tpu_custom_call.1} parent=11 // pred_region
          _
        $region20: #{tpu_custom_call.1} parent=11 // pred_fallthru
          _
        // Predicated region
        $region21: #{tpu_custom_call.1} parent=11 // pred_check
          %p303 = pneg %p205
        $region22: #{tpu_custom_call.1} parent=11 // pred_check_branch
          %305 = sbr.rel (%p303) target = $region24
        $region23: #{tpu_custom_call.1} parent=11 // pred_region
          _
        $region24: #{tpu_custom_call.1} parent=11 // pred_fallthru
          _
        // Predicated region
        $region25: #{tpu_custom_call.1} parent=11 // pred_check
          %p306 = pneg %p226
        $region26: #{tpu_custom_call.1} parent=11 // pred_check_branch
          %308 = sbr.rel (%p306) target = $region28
        $region27: #{tpu_custom_call.1} parent=11 // pred_region
          _
        $region28: #{tpu_custom_call.1} parent=11 // pred_fallthru
          _
      $region12: #{tpu_custom_call.1} parent=5 // pred_fallthru
        _
      %p309 = scmp.lt.s32.totalorder %s22, 2
      // Predicated region
      $region29: #{tpu_custom_call.1} parent=5 // pred_check
        %p310 = pneg %p309
      $region30: #{tpu_custom_call.1} parent=5 // pred_check_branch
        %312 = sbr.rel (%p310) target = $region32
      $region31: #{tpu_custom_call.1} parent=5 // pred_region
        // Predicated region
        $region33: #{tpu_custom_call.1} parent=31 // pred_check
          %p313 = pneg %p56
        $region34: #{tpu_custom_call.1} parent=31 // pred_check_branch
          %315 = sbr.rel (%p313) target = $region36
        $region35: #{tpu_custom_call.1} parent=31 // pred_region
          %s316 = smul.u32 2, %s29
          %s317 = smul.u32 2, %s30
          %p318 = scmp.lt.s32.totalorder %s316, 3
          %s319 = scalar_select %p318, %s316, 3
          %p320 = scmp.lt.s32.totalorder %s317, 1
          %s321 = scalar_select %p320, %s317, 1
          %s322 = smul.addr %s319, 2
          %s323 = sadd.s32 %s321, %s322
          %s324 = smul.addr %s323, 8
          %s325 = scalar_lea.vmem %s0, %s324
          %s326 = smul.u32 2, %s29
          %s327 = smul.u32 2, %s30
        $region36: #{tpu_custom_call.1} parent=31 // pred_fallthru
          _
        // Predicated region
        $region37: #{tpu_custom_call.1} parent=31 // pred_check
          %p328 = pneg %p84
        $region38: #{tpu_custom_call.1} parent=31 // pred_check_branch
          %330 = sbr.rel (%p328) target = $region40
        $region39: #{tpu_custom_call.1} parent=31 // pred_region
          %s331 = smul.u32 2, %s29
          %s332 = smul.u32 2, %s30
          %p333 = scmp.lt.s32.totalorder %s331, 3
          %s334 = scalar_select %p333, %s331, 3
          %p335 = scmp.lt.s32.totalorder %s332, 1
          %s336 = scalar_select %p335, %s332, 1
          %s337 = smul.addr %s334, 2
          %s338 = sadd.s32 %s336, %s337
          %s339 = smul.addr %s338, 8
          %s340 = scalar_lea.vmem %s1, %s339
          %s341 = smul.u32 2, %s29
          %s342 = smul.u32 2, %s30
        $region40: #{tpu_custom_call.1} parent=31 // pred_fallthru
          _
        // Predicated region
        $region41: #{tpu_custom_call.1} parent=31 // pred_check
          %p343 = pneg %p110
        $region42: #{tpu_custom_call.1} parent=31 // pred_check_branch
          %345 = sbr.rel (%p343) target = $region44
        $region43: #{tpu_custom_call.1} parent=31 // pred_region
          %s346 = smul.u32 2, %s29
          %p347 = scmp.lt.s32.totalorder %s346, 3
          %s348 = scalar_select %p347, %s346, 3
          %s349 = smul.addr %s348, 8
          %s350 = smul.addr %s349, 8
          %s351 = scalar_lea.vmem %s2, %s350
          %s352 = smul.u32 2, %s29
        $region44: #{tpu_custom_call.1} parent=31 // pred_fallthru
          _
        // Predicated region
        $region45: #{tpu_custom_call.1} parent=31 // pred_check
          %p353 = pneg %p136
        $region46: #{tpu_custom_call.1} parent=31 // pred_check_branch
          %355 = sbr.rel (%p353) target = $region48
        $region47: #{tpu_custom_call.1} parent=31 // pred_region
          %s356 = smul.u32 2, %s29
          %p357 = scmp.lt.s32.totalorder %s356, 3
          %s358 = scalar_select %p357, %s356, 3
          %s359 = smul.addr %s358, 16
          %s360 = smul.addr %s359, 8
          %s361 = scalar_lea.vmem %s3, %s360
          %s362 = smul.u32 2, %s29
        $region48: #{tpu_custom_call.1} parent=31 // pred_fallthru
          _
      $region32: #{tpu_custom_call.1} parent=5 // pred_fallthru
        _
      %p363 = scmp.le.s32.totalorder 1, %s22
      %p364 = scmp.lt.s32.totalorder %s22, 3
      %p365 = pnand %p363, %p364
      %p366 = pneg %p365
      // Predicated region
      $region49: #{tpu_custom_call.1} parent=5 // pred_check
        _
      $region50: #{tpu_custom_call.1} parent=5 // pred_check_branch
        %368 = sbr.rel (%p365) target = $region52
      $region51: #{tpu_custom_call.1} parent=5 // pred_region
        %s369 = ssub.s32 %s22, 1
        %s370 = smul.u32 2, %s31
        %s371 = smul.u32 2, %s32
        %p372 = scmp.lt.s32.totalorder %s370, 3
        %s373 = scalar_select %p372, %s370, 3
        %p374 = scmp.lt.s32.totalorder %s371, 1
        %s375 = scalar_select %p374, %s371, 1
        %s376 = smul.addr %s373, 2
        %s377 = sadd.s32 %s375, %s376
        %s378 = smul.addr %s377, 8
        %s379 = scalar_lea.vmem %s0, %s378
        %p380 = pneg %p62
        %p381 = pneg %p59
        %s382 = smul.u32 2, %s31
        %s383 = smul.u32 2, %s32
        %p384 = scmp.lt.s32.totalorder %s382, 3
        %s385 = scalar_select %p384, %s382, 3
        %p386 = scmp.lt.s32.totalorder %s383, 1
        %s387 = scalar_select %p386, %s383, 1
        %s388 = smul.addr %s385, 2
        %s389 = sadd.s32 %s387, %s388
        %s390 = smul.addr %s389, 8
        %s391 = scalar_lea.vmem %s1, %s390
        %p392 = pneg %p90
        %p393 = pneg %p87
        %s394 = smul.u32 2, %s31
        %p395 = scmp.lt.s32.totalorder %s394, 3
        %s396 = scalar_select %p395, %s394, 3
        %s397 = smul.addr %s396, 8
        %s398 = smul.addr %s397, 8
        %s399 = scalar_lea.vmem %s2, %s398
        %p400 = pneg %p116
        %p401 = pneg %p113
        %s402 = smul.u32 2, %s31
        %p403 = scmp.lt.s32.totalorder %s402, 3
        %s404 = scalar_select %p403, %s402, 3
        %s405 = smul.addr %s404, 16
        %s406 = smul.addr %s405, 8
        %s407 = scalar_lea.vmem %s3, %s406
        %p408 = pneg %p142
        %p409 = pneg %p139
        %p410 = pneg %p163
        %p411 = pneg %p160
        %p412 = pneg %p184
        %p413 = pneg %p181
        %p414 = pneg %p205
        %p415 = pneg %p202
        %p416 = pneg %p226
        %p417 = pneg %p223
        %p418 = pneg %p254
        %p419 = pneg %p251
        %s420 = sand.u32 %s241, 1
        %s421 = scalar_lea.sflag [#allocation3], %s420
        %s422 = sand.u32 %s241, 1
        %s423 = smul.addr %s422, 32
        %s424 = scalar_lea.vmem [#allocation2], %s423
        %p425 = pneg %p282
        %p426 = pneg %p279
        %s427 = sand.u32 %s269, 1
        %s428 = scalar_lea.sflag [#allocation5], %s427
        %s429 = sand.u32 %s269, 1
        %s430 = smul.addr %s429, 32
        %s431 = scalar_lea.vmem [#allocation4], %s430
        %s432 = smul.u32 2, %s31
        %s433 = smul.u32 2, %s32
        %p434 = scmp.lt.s32.totalorder %s432, 3
        %s435 = scalar_select %p434, %s432, 3
        %p436 = scmp.lt.s32.totalorder %s433, 1
        %s437 = scalar_select %p436, %s433, 1
        %s438 = smul.addr %s435, 2
        %s439 = sadd.s32 %s437, %s438
        %s440 = smul.addr %s439, 8
        %s441 = scalar_lea.vmem %s0, %s440
        %s442 = smul.u32 2, %s31
        %s443 = smul.u32 2, %s32
        %s444 = smul.u32 2, %s31
        %s445 = smul.u32 2, %s32
        %p446 = scmp.lt.s32.totalorder %s444, 3
        %s447 = scalar_select %p446, %s444, 3
        %p448 = scmp.lt.s32.totalorder %s445, 1
        %s449 = scalar_select %p448, %s445, 1
        %s450 = smul.addr %s447, 2
        %s451 = sadd.s32 %s449, %s450
        %s452 = smul.addr %s451, 8
        %s453 = scalar_lea.vmem %s1, %s452
        %s454 = smul.u32 2, %s31
        %s455 = smul.u32 2, %s32
        %s456 = smul.u32 2, %s31
        %p457 = scmp.lt.s32.totalorder %s456, 3
        %s458 = scalar_select %p457, %s456, 3
        %s459 = smul.addr %s458, 8
        %s460 = smul.addr %s459, 8
        %s461 = scalar_lea.vmem %s2, %s460
        %s462 = smul.u32 2, %s31
        %s463 = smul.u32 2, %s31
        %p464 = scmp.lt.s32.totalorder %s463, 3
        %s465 = scalar_select %p464, %s463, 3
        %s466 = smul.addr %s465, 16
        %s467 = smul.addr %s466, 8
        %s468 = scalar_lea.vmem %s3, %s467
        %s469 = smul.u32 2, %s31
        %s470 = smul.u32 2, %s31
        %s471 = smul.u32 2, %s32
        %s472 = smul.u32 2, %s31
        %s473 = smul.u32 2, %s32
        %v474 = vld [vmem:[%s441] sm:$0xff]
        %v475 = vld [vmem:[%s441 + $0x8] sm:$0xff]
        %v476 = vld [vmem:[%s441 + $0x10] sm:$0xff]
        %v477 = vld [vmem:[%s441 + $0x18] sm:$0xff]
        %v478 = vld [vmem:[%s4] sm:$0xff]
        %v479 = vld [vmem:[%s4 + $0x8] sm:$0xff]
        %v480 = vld [vmem:[%s4 + $0x10] sm:$0xff]
        %v481 = vld [vmem:[%s4 + $0x18] sm:$0xff]
        %v482 = vld [vmem:[%s4 + $0x20] sm:$0xff]
        %v483 = vld [vmem:[%s4 + $0x28] sm:$0xff]
        %v484 = vld [vmem:[%s4 + $0x30] sm:$0xff]
        %v485 = vld [vmem:[%s4 + $0x38] sm:$0xff]
        %vm486 = vcmask 523264
        %v488 = vsel %vm486, %v474, 0
        %v491 = vsel %vm486, %v475, 0
        %v494 = vsel %vm486, %v476, 0
        %v497 = vsel %vm486, %v477, 0
        %499 = vmatpush.msra.mxu0 0.0
        %500 = vmatpush.msra.mxu0 0.0
        %501 = vmatpush.msra.mxu0 0.0
        %502 = vmatpush.msra.mxu0 0.0
        %503 = vmatpush.msra.mxu0 0.0
        %504 = vmatpush.msra.mxu0 0.0
        %505 = vmatpush.msra.mxu0 0.0
        %506 = vmatpush.msra.mxu0 0.0
        %v507 = vand.u32 %v485, 4294901760
        %508 = vmatpush.msra.mxu0 %v507
        %v509 = vand.u32 %v484, 4294901760
        %510 = vmatpush.msra.mxu0 %v509
        %v511 = vand.u32 %v483, 4294901760
        %512 = vmatpush.msra.mxu0 %v511
        %v513 = vand.u32 %v482, 4294901760
        %514 = vmatpush.msra.mxu0 %v513
        %v515 = vand.u32 %v481, 4294901760
        %516 = vmatpush.msra.mxu0 %v515
        %v517 = vand.u32 %v480, 4294901760
        %518 = vmatpush.msra.mxu0 %v517
        %v519 = vand.u32 %v479, 4294901760
        %520 = vmatpush.msra.mxu0 %v519
        %v521 = vand.u32 %v478, 4294901760
        %522 = vmatpush.msra.mxu0 %v521
        %v523 = vand.u32 %v488, 4294901760
        %v524 = vsub.f32 %v488, %v523
        %v525 = vand.u32 %v524, 4294901760
        %v526 = vsub.f32 %v524, %v525
        %v527 = vand.u32 %v526, 4294901760
        %528 = vmatmul.f32.gmra.mxu0 %v527
        %v529 = vpop.f32.mrf.mxu0
        %v530 = vadd.f32 0.0, %v529
        %v531 = vand.u32 %v491, 4294901760
        %v532 = vsub.f32 %v491, %v531
        %v533 = vand.u32 %v532, 4294901760
        %v534 = vsub.f32 %v532, %v533
        %v535 = vand.u32 %v534, 4294901760
        %536 = vmatmul.f32.gmra.mxu0 %v535
        %v537 = vpop.f32.mrf.mxu0
        %v538 = vadd.f32 0.0, %v537
        %v539 = vand.u32 %v494, 4294901760
        %v540 = vsub.f32 %v494, %v539
        %v541 = vand.u32 %v540, 4294901760
        %v542 = vsub.f32 %v540, %v541
        %v543 = vand.u32 %v542, 4294901760
        %544 = vmatmul.f32.gmra.mxu0 %v543
        %v545 = vpop.f32.mrf.mxu0
        %v546 = vadd.f32 0.0, %v545
        %v547 = vand.u32 %v497, 4294901760
        %v548 = vsub.f32 %v497, %v547
        %v549 = vand.u32 %v548, 4294901760
        %v550 = vsub.f32 %v548, %v549
        %v551 = vand.u32 %v550, 4294901760
        %552 = vmatmul.f32.gmra.mxu0 %v551
        %v553 = vpop.f32.mrf.mxu0
        %v554 = vadd.f32 0.0, %v553
        %555 = vdwg.mxu0
        %556 = vmatpush.msra.mxu0 0.0
        %557 = vmatpush.msra.mxu0 0.0
        %558 = vmatpush.msra.mxu0 0.0
        %559 = vmatpush.msra.mxu0 0.0
        %560 = vmatpush.msra.mxu0 0.0
        %561 = vmatpush.msra.mxu0 0.0
        %562 = vmatpush.msra.mxu0 0.0
        %563 = vmatpush.msra.mxu0 0.0
        %v564 = vand.u32 %v485, 4294901760
        %v565 = vsub.f32 %v485, %v564
        %v566 = vand.u32 %v565, 4294901760
        %v567 = vsub.f32 %v565, %v566
        %v568 = vand.u32 %v567, 4294901760
        %569 = vmatpush.msra.mxu0 %v568
        %v570 = vand.u32 %v484, 4294901760
        %v571 = vsub.f32 %v484, %v570
        %v572 = vand.u32 %v571, 4294901760
        %v573 = vsub.f32 %v571, %v572
        %v574 = vand.u32 %v573, 4294901760
        %575 = vmatpush.msra.mxu0 %v574
        %v576 = vand.u32 %v483, 4294901760
        %v577 = vsub.f32 %v483, %v576
        %v578 = vand.u32 %v577, 4294901760
        %v579 = vsub.f32 %v577, %v578
        %v580 = vand.u32 %v579, 4294901760
        %581 = vmatpush.msra.mxu0 %v580
        %v582 = vand.u32 %v482, 4294901760
        %v583 = vsub.f32 %v482, %v582
        %v584 = vand.u32 %v583, 4294901760
        %v585 = vsub.f32 %v583, %v584
        %v586 = vand.u32 %v585, 4294901760
        %587 = vmatpush.msra.mxu0 %v586
        %v588 = vand.u32 %v481, 4294901760
        %v589 = vsub.f32 %v481, %v588
        %v590 = vand.u32 %v589, 4294901760
        %v591 = vsub.f32 %v589, %v590
        %v592 = vand.u32 %v591, 4294901760
        %593 = vmatpush.msra.mxu0 %v592
        %v594 = vand.u32 %v480, 4294901760
        %v595 = vsub.f32 %v480, %v594
        %v596 = vand.u32 %v595, 4294901760
        %v597 = vsub.f32 %v595, %v596
        %v598 = vand.u32 %v597, 4294901760
        %599 = vmatpush.msra.mxu0 %v598
        %v600 = vand.u32 %v479, 4294901760
        %v601 = vsub.f32 %v479, %v600
        %v602 = vand.u32 %v601, 4294901760
        %v603 = vsub.f32 %v601, %v602
        %v604 = vand.u32 %v603, 4294901760
        %605 = vmatpush.msra.mxu0 %v604
        %v606 = vand.u32 %v478, 4294901760
        %v607 = vsub.f32 %v478, %v606
        %v608 = vand.u32 %v607, 4294901760
        %v609 = vsub.f32 %v607, %v608
        %v610 = vand.u32 %v609, 4294901760
        %611 = vmatpush.msra.mxu0 %v610
        %v612 = vand.u32 %v488, 4294901760
        %613 = vmatmul.f32.gmra.mxu0 %v612
        %v614 = vpop.f32.mrf.mxu0
        %v615 = vadd.f32 %v530, %v614
        %v616 = vand.u32 %v491, 4294901760
        %617 = vmatmul.f32.gmra.mxu0 %v616
        %v618 = vpop.f32.mrf.mxu0
        %v619 = vadd.f32 %v538, %v618
        %v620 = vand.u32 %v494, 4294901760
        %621 = vmatmul.f32.gmra.mxu0 %v620
        %v622 = vpop.f32.mrf.mxu0
        %v623 = vadd.f32 %v546, %v622
        %v624 = vand.u32 %v497, 4294901760
        %625 = vmatmul.f32.gmra.mxu0 %v624
        %v626 = vpop.f32.mrf.mxu0
        %v627 = vadd.f32 %v554, %v626
        %628 = vdwg.mxu0
        %629 = vmatpush.msra.mxu0 0.0
        %630 = vmatpush.msra.mxu0 0.0
        %631 = vmatpush.msra.mxu0 0.0
        %632 = vmatpush.msra.mxu0 0.0
        %633 = vmatpush.msra.mxu0 0.0
        %634 = vmatpush.msra.mxu0 0.0
        %635 = vmatpush.msra.mxu0 0.0
        %636 = vmatpush.msra.mxu0 0.0
        %v637 = vand.u32 %v485, 4294901760
        %v638 = vsub.f32 %v485, %v637
        %639 = vmatpush.msra.mxu0 %v638
        %v640 = vand.u32 %v484, 4294901760
        %v641 = vsub.f32 %v484, %v640
        %642 = vmatpush.msra.mxu0 %v641
        %v643 = vand.u32 %v483, 4294901760
        %v644 = vsub.f32 %v483, %v643
        %645 = vmatpush.msra.mxu0 %v644
        %v646 = vand.u32 %v482, 4294901760
        %v647 = vsub.f32 %v482, %v646
        %648 = vmatpush.msra.mxu0 %v647
        %v649 = vand.u32 %v481, 4294901760
        %v650 = vsub.f32 %v481, %v649
        %651 = vmatpush.msra.mxu0 %v650
        %v652 = vand.u32 %v480, 4294901760
        %v653 = vsub.f32 %v480, %v652
        %654 = vmatpush.msra.mxu0 %v653
        %v655 = vand.u32 %v479, 4294901760
        %v656 = vsub.f32 %v479, %v655
        %657 = vmatpush.msra.mxu0 %v656
        %v658 = vand.u32 %v478, 4294901760
        %v659 = vsub.f32 %v478, %v658
        %660 = vmatpush.msra.mxu0 %v659
        %v661 = vand.u32 %v488, 4294901760
        %v662 = vsub.f32 %v488, %v661
        %663 = vmatmul.f32.gmra.mxu0 %v662
        %v664 = vpop.f32.mrf.mxu0
        %v665 = vadd.f32 %v615, %v664
        %v666 = vand.u32 %v491, 4294901760
        %v667 = vsub.f32 %v491, %v666
        %668 = vmatmul.f32.gmra.mxu0 %v667
        %v669 = vpop.f32.mrf.mxu0
        %v670 = vadd.f32 %v619, %v669
        %v671 = vand.u32 %v494, 4294901760
        %v672 = vsub.f32 %v494, %v671
        %673 = vmatmul.f32.gmra.mxu0 %v672
        %v674 = vpop.f32.mrf.mxu0
        %v675 = vadd.f32 %v623, %v674
        %v676 = vand.u32 %v497, 4294901760
        %v677 = vsub.f32 %v497, %v676
        %678 = vmatmul.f32.gmra.mxu0 %v677
        %v679 = vpop.f32.mrf.mxu0
        %v680 = vadd.f32 %v627, %v679
        %681 = vdwg.mxu0
        %682 = vmatpush.msra.mxu0 0.0
        %683 = vmatpush.msra.mxu0 0.0
        %684 = vmatpush.msra.mxu0 0.0
        %685 = vmatpush.msra.mxu0 0.0
        %686 = vmatpush.msra.mxu0 0.0
        %687 = vmatpush.msra.mxu0 0.0
        %688 = vmatpush.msra.mxu0 0.0
        %689 = vmatpush.msra.mxu0 0.0
        %v690 = vand.u32 %v485, 4294901760
        %691 = vmatpush.msra.mxu0 %v690
        %v692 = vand.u32 %v484, 4294901760
        %693 = vmatpush.msra.mxu0 %v692
        %v694 = vand.u32 %v483, 4294901760
        %695 = vmatpush.msra.mxu0 %v694
        %v696 = vand.u32 %v482, 4294901760
        %697 = vmatpush.msra.mxu0 %v696
        %v698 = vand.u32 %v481, 4294901760
        %699 = vmatpush.msra.mxu0 %v698
        %v700 = vand.u32 %v480, 4294901760
        %701 = vmatpush.msra.mxu0 %v700
        %v702 = vand.u32 %v479, 4294901760
        %703 = vmatpush.msra.mxu0 %v702
        %v704 = vand.u32 %v478, 4294901760
        %705 = vmatpush.msra.mxu0 %v704
        %v706 = vand.u32 %v488, 4294901760
        %v707 = vsub.f32 %v488, %v706
        %v708 = vand.u32 %v707, 4294901760
        %709 = vmatmul.f32.gmra.mxu0 %v708
        %v710 = vpop.f32.mrf.mxu0
        %v711 = vadd.f32 %v665, %v710
        %v712 = vand.u32 %v491, 4294901760
        %v713 = vsub.f32 %v491, %v712
        %v714 = vand.u32 %v713, 4294901760
        %715 = vmatmul.f32.gmra.mxu0 %v714
        %v716 = vpop.f32.mrf.mxu0
        %v717 = vadd.f32 %v670, %v716
        %v718 = vand.u32 %v494, 4294901760
        %v719 = vsub.f32 %v494, %v718
        %v720 = vand.u32 %v719, 4294901760
        %721 = vmatmul.f32.gmra.mxu0 %v720
        %v722 = vpop.f32.mrf.mxu0
        %v723 = vadd.f32 %v675, %v722
        %v724 = vand.u32 %v497, 4294901760
        %v725 = vsub.f32 %v497, %v724
        %v726 = vand.u32 %v725, 4294901760
        %727 = vmatmul.f32.gmra.mxu0 %v726
        %v728 = vpop.f32.mrf.mxu0
        %v729 = vadd.f32 %v680, %v728
        %730 = vdwg.mxu0
        %731 = vmatpush.msra.mxu0 0.0
        %732 = vmatpush.msra.mxu0 0.0
        %733 = vmatpush.msra.mxu0 0.0
        %734 = vmatpush.msra.mxu0 0.0
        %735 = vmatpush.msra.mxu0 0.0
        %736 = vmatpush.msra.mxu0 0.0
        %737 = vmatpush.msra.mxu0 0.0
        %738 = vmatpush.msra.mxu0 0.0
        %v739 = vand.u32 %v485, 4294901760
        %v740 = vsub.f32 %v485, %v739
        %v741 = vand.u32 %v740, 4294901760
        %742 = vmatpush.msra.mxu0 %v741
        %v743 = vand.u32 %v484, 4294901760
        %v744 = vsub.f32 %v484, %v743
        %v745 = vand.u32 %v744, 4294901760
        %746 = vmatpush.msra.mxu0 %v745
        %v747 = vand.u32 %v483, 4294901760
        %v748 = vsub.f32 %v483, %v747
        %v749 = vand.u32 %v748, 4294901760
        %750 = vmatpush.msra.mxu0 %v749
        %v751 = vand.u32 %v482, 4294901760
        %v752 = vsub.f32 %v482, %v751
        %v753 = vand.u32 %v752, 4294901760
        %754 = vmatpush.msra.mxu0 %v753
        %v755 = vand.u32 %v481, 4294901760
        %v756 = vsub.f32 %v481, %v755
        %v757 = vand.u32 %v756, 4294901760
        %758 = vmatpush.msra.mxu0 %v757
        %v759 = vand.u32 %v480, 4294901760
        %v760 = vsub.f32 %v480, %v759
        %v761 = vand.u32 %v760, 4294901760
        %762 = vmatpush.msra.mxu0 %v761
        %v763 = vand.u32 %v479, 4294901760
        %v764 = vsub.f32 %v479, %v763
        %v765 = vand.u32 %v764, 4294901760
        %766 = vmatpush.msra.mxu0 %v765
        %v767 = vand.u32 %v478, 4294901760
        %v768 = vsub.f32 %v478, %v767
        %v769 = vand.u32 %v768, 4294901760
        %770 = vmatpush.msra.mxu0 %v769
        %v771 = vand.u32 %v488, 4294901760
        %772 = vmatmul.f32.gmra.mxu0 %v771
        %v773 = vpop.f32.mrf.mxu0
        %v774 = vadd.f32 %v711, %v773
        %v775 = vand.u32 %v491, 4294901760
        %776 = vmatmul.f32.gmra.mxu0 %v775
        %v777 = vpop.f32.mrf.mxu0
        %v778 = vadd.f32 %v717, %v777
        %v779 = vand.u32 %v494, 4294901760
        %780 = vmatmul.f32.gmra.mxu0 %v779
        %v781 = vpop.f32.mrf.mxu0
        %v782 = vadd.f32 %v723, %v781
        %v783 = vand.u32 %v497, 4294901760
        %784 = vmatmul.f32.gmra.mxu0 %v783
        %v785 = vpop.f32.mrf.mxu0
        %v786 = vadd.f32 %v729, %v785
        %787 = vdwg.mxu0
        %788 = vmatpush.msra.mxu0 0.0
        %789 = vmatpush.msra.mxu0 0.0
        %790 = vmatpush.msra.mxu0 0.0
        %791 = vmatpush.msra.mxu0 0.0
        %792 = vmatpush.msra.mxu0 0.0
        %793 = vmatpush.msra.mxu0 0.0
        %794 = vmatpush.msra.mxu0 0.0
        %795 = vmatpush.msra.mxu0 0.0
        %v796 = vand.u32 %v485, 4294901760
        %797 = vmatpush.msra.mxu0 %v796
        %v798 = vand.u32 %v484, 4294901760
        %799 = vmatpush.msra.mxu0 %v798
        %v800 = vand.u32 %v483, 4294901760
        %801 = vmatpush.msra.mxu0 %v800
        %v802 = vand.u32 %v482, 4294901760
        %803 = vmatpush.msra.mxu0 %v802
        %v804 = vand.u32 %v481, 4294901760
        %805 = vmatpush.msra.mxu0 %v804
        %v806 = vand.u32 %v480, 4294901760
        %807 = vmatpush.msra.mxu0 %v806
        %v808 = vand.u32 %v479, 4294901760
        %809 = vmatpush.msra.mxu0 %v808
        %v810 = vand.u32 %v478, 4294901760
        %811 = vmatpush.msra.mxu0 %v810
        %v812 = vand.u32 %v488, 4294901760
        %813 = vmatmul.f32.gmra.mxu0 %v812
        %v814 = vpop.f32.mrf.mxu0
        %v815 = vadd.f32 %v774, %v814
        %v816 = vand.u32 %v491, 4294901760
        %817 = vmatmul.f32.gmra.mxu0 %v816
        %v818 = vpop.f32.mrf.mxu0
        %v819 = vadd.f32 %v778, %v818
        %v820 = vand.u32 %v494, 4294901760
        %821 = vmatmul.f32.gmra.mxu0 %v820
        %v822 = vpop.f32.mrf.mxu0
        %v823 = vadd.f32 %v782, %v822
        %v824 = vand.u32 %v497, 4294901760
        %825 = vmatmul.f32.gmra.mxu0 %v824
        %v826 = vpop.f32.mrf.mxu0
        %v827 = vadd.f32 %v786, %v826
        %828 = vdwg.mxu0
        %v829 = vld [vmem:[%s5] sm:$0x1]
        %v831 = vperm.slane %v829, 0
        %v833 = vadd.f32 %v815, %v831
        %v834 = vadd.f32 %v819, %v831
        %v835 = vadd.f32 %v823, %v831
        %v836 = vadd.f32 %v827, %v831
        %v837 = vld [vmem:[%s453] sm:$0xff]
        %v838 = vld [vmem:[%s453 + $0x8] sm:$0xff]
        %v839 = vld [vmem:[%s453 + $0x10] sm:$0xff]
        %v840 = vld [vmem:[%s453 + $0x18] sm:$0xff]
        %v841 = vadd.f32 %v833, %v837
        %v842 = vadd.f32 %v834, %v838
        %v843 = vadd.f32 %v835, %v839
        %v844 = vadd.f32 %v836, %v840
        %v845 = vmul.f32 %v841, 0.70710677
        %v846 = vmul.f32 %v842, 0.70710677
        %v847 = vmul.f32 %v843, 0.70710677
        %v848 = vmul.f32 %v844, 0.70710677
        %v849 = vld [vmem:[%s461] sm:$0xff]
        %v850 = vld [vmem:[%s461 + $0x8] sm:$0xff]
        %v851 = vld [vmem:[%s461 + $0x10] sm:$0xff]
        %v852 = vld [vmem:[%s461 + $0x18] sm:$0xff]
        %v853 = vld [vmem:[%s461 + $0x20] sm:$0xff]
        %v854 = vld [vmem:[%s461 + $0x28] sm:$0xff]
        %v855 = vld [vmem:[%s461 + $0x30] sm:$0xff]
        %v856 = vld [vmem:[%s461 + $0x38] sm:$0xff]
        %v857 = vld [vmem:[%s461 + $0x40] sm:$0xff]
        %v858 = vld [vmem:[%s461 + $0x48] sm:$0xff]
        %v859 = vld [vmem:[%s461 + $0x50] sm:$0xff]
        %v860 = vld [vmem:[%s461 + $0x58] sm:$0xff]
        %v861 = vld [vmem:[%s461 + $0x60] sm:$0xff]
        %v862 = vld [vmem:[%s461 + $0x68] sm:$0xff]
        %v863 = vld [vmem:[%s461 + $0x70] sm:$0xff]
        %v864 = vld [vmem:[%s461 + $0x78] sm:$0xff]
        %v866 = vsel %vm486, %v845, 0
        %v869 = vsel %vm486, %v846, 0
        %871 = vmatpush.msra.mxu0 0.0
        %872 = vmatpush.msra.mxu0 0.0
        %873 = vmatpush.msra.mxu0 0.0
        %874 = vmatpush.msra.mxu0 0.0
        %875 = vmatpush.msra.mxu0 0.0
        %876 = vmatpush.msra.mxu0 0.0
        %877 = vmatpush.msra.mxu0 0.0
        %878 = vmatpush.msra.mxu0 0.0
        %v879 = vand.u32 %v856, 4294901760
        %880 = vmatpush.msra.mxu0 %v879
        %v881 = vand.u32 %v855, 4294901760
        %882 = vmatpush.msra.mxu0 %v881
        %v883 = vand.u32 %v854, 4294901760
        %884 = vmatpush.msra.mxu0 %v883
        %v885 = vand.u32 %v853, 4294901760
        %886 = vmatpush.msra.mxu0 %v885
        %v887 = vand.u32 %v852, 4294901760
        %888 = vmatpush.msra.mxu0 %v887
        %v889 = vand.u32 %v851, 4294901760
        %890 = vmatpush.msra.mxu0 %v889
        %v891 = vand.u32 %v850, 4294901760
        %892 = vmatpush.msra.mxu0 %v891
        %v893 = vand.u32 %v849, 4294901760
        %894 = vmatpush.msra.mxu0 %v893
        %v895 = vand.u32 %v866, 4294901760
        %v896 = vsub.f32 %v866, %v895
        %v897 = vand.u32 %v896, 4294901760
        %v898 = vsub.f32 %v896, %v897
        %v899 = vand.u32 %v898, 4294901760
        %900 = vmatmul.f32.gmra.mxu0 %v899
        %v901 = vpop.f32.mrf.mxu0
        %v902 = vadd.f32 0.0, %v901
        %v903 = vand.u32 %v869, 4294901760
        %v904 = vsub.f32 %v869, %v903
        %v905 = vand.u32 %v904, 4294901760
        %v906 = vsub.f32 %v904, %v905
        %v907 = vand.u32 %v906, 4294901760
        %908 = vmatmul.f32.gmra.mxu0 %v907
        %v909 = vpop.f32.mrf.mxu0
        %v910 = vadd.f32 0.0, %v909
        %911 = vdwg.mxu0
        %912 = vmatpush.msra.mxu0 0.0
        %913 = vmatpush.msra.mxu0 0.0
        %914 = vmatpush.msra.mxu0 0.0
        %915 = vmatpush.msra.mxu0 0.0
        %916 = vmatpush.msra.mxu0 0.0
        %917 = vmatpush.msra.mxu0 0.0
        %918 = vmatpush.msra.mxu0 0.0
        %919 = vmatpush.msra.mxu0 0.0
        %v920 = vand.u32 %v856, 4294901760
        %v921 = vsub.f32 %v856, %v920
        %v922 = vand.u32 %v921, 4294901760
        %v923 = vsub.f32 %v921, %v922
        %v924 = vand.u32 %v923, 4294901760
        %925 = vmatpush.msra.mxu0 %v924
        %v926 = vand.u32 %v855, 4294901760
        %v927 = vsub.f32 %v855, %v926
        %v928 = vand.u32 %v927, 4294901760
        %v929 = vsub.f32 %v927, %v928
        %v930 = vand.u32 %v929, 4294901760
        %931 = vmatpush.msra.mxu0 %v930
        %v932 = vand.u32 %v854, 4294901760
        %v933 = vsub.f32 %v854, %v932
        %v934 = vand.u32 %v933, 4294901760
        %v935 = vsub.f32 %v933, %v934
        %v936 = vand.u32 %v935, 4294901760
        %937 = vmatpush.msra.mxu0 %v936
        %v938 = vand.u32 %v853, 4294901760
        %v939 = vsub.f32 %v853, %v938
        %v940 = vand.u32 %v939, 4294901760
        %v941 = vsub.f32 %v939, %v940
        %v942 = vand.u32 %v941, 4294901760
        %943 = vmatpush.msra.mxu0 %v942
        %v944 = vand.u32 %v852, 4294901760
        %v945 = vsub.f32 %v852, %v944
        %v946 = vand.u32 %v945, 4294901760
        %v947 = vsub.f32 %v945, %v946
        %v948 = vand.u32 %v947, 4294901760
        %949 = vmatpush.msra.mxu0 %v948
        %v950 = vand.u32 %v851, 4294901760
        %v951 = vsub.f32 %v851, %v950
        %v952 = vand.u32 %v951, 4294901760
        %v953 = vsub.f32 %v951, %v952
        %v954 = vand.u32 %v953, 4294901760
        %955 = vmatpush.msra.mxu0 %v954
        %v956 = vand.u32 %v850, 4294901760
        %v957 = vsub.f32 %v850, %v956
        %v958 = vand.u32 %v957, 4294901760
        %v959 = vsub.f32 %v957, %v958
        %v960 = vand.u32 %v959, 4294901760
        %961 = vmatpush.msra.mxu0 %v960
        %v962 = vand.u32 %v849, 4294901760
        %v963 = vsub.f32 %v849, %v962
        %v964 = vand.u32 %v963, 4294901760
        %v965 = vsub.f32 %v963, %v964
        %v966 = vand.u32 %v965, 4294901760
        %967 = vmatpush.msra.mxu0 %v966
        %v968 = vand.u32 %v866, 4294901760
        %969 = vmatmul.f32.gmra.mxu0 %v968
        %v970 = vpop.f32.mrf.mxu0
        %v971 = vadd.f32 %v902, %v970
        %v972 = vand.u32 %v869, 4294901760
        %973 = vmatmul.f32.gmra.mxu0 %v972
        %v974 = vpop.f32.mrf.mxu0
        %v975 = vadd.f32 %v910, %v974
        %976 = vdwg.mxu0
        %977 = vmatpush.msra.mxu0 0.0
        %978 = vmatpush.msra.mxu0 0.0
        %979 = vmatpush.msra.mxu0 0.0
        %980 = vmatpush.msra.mxu0 0.0
        %981 = vmatpush.msra.mxu0 0.0
        %982 = vmatpush.msra.mxu0 0.0
        %983 = vmatpush.msra.mxu0 0.0
        %984 = vmatpush.msra.mxu0 0.0
        %v985 = vand.u32 %v856, 4294901760
        %v986 = vsub.f32 %v856, %v985
        %987 = vmatpush.msra.mxu0 %v986
        %v988 = vand.u32 %v855, 4294901760
        %v989 = vsub.f32 %v855, %v988
        %990 = vmatpush.msra.mxu0 %v989
        %v991 = vand.u32 %v854, 4294901760
        %v992 = vsub.f32 %v854, %v991
        %993 = vmatpush.msra.mxu0 %v992
        %v994 = vand.u32 %v853, 4294901760
        %v995 = vsub.f32 %v853, %v994
        %996 = vmatpush.msra.mxu0 %v995
        %v997 = vand.u32 %v852, 4294901760
        %v998 = vsub.f32 %v852, %v997
        %999 = vmatpush.msra.mxu0 %v998
        %v1000 = vand.u32 %v851, 4294901760
        %v1001 = vsub.f32 %v851, %v1000
        %1002 = vmatpush.msra.mxu0 %v1001
        %v1003 = vand.u32 %v850, 4294901760
        %v1004 = vsub.f32 %v850, %v1003
        %1005 = vmatpush.msra.mxu0 %v1004
        %v1006 = vand.u32 %v849, 4294901760
        %v1007 = vsub.f32 %v849, %v1006
        %1008 = vmatpush.msra.mxu0 %v1007
        %v1009 = vand.u32 %v866, 4294901760
        %v1010 = vsub.f32 %v866, %v1009
        %1011 = vmatmul.f32.gmra.mxu0 %v1010
        %v1012 = vpop.f32.mrf.mxu0
        %v1013 = vadd.f32 %v971, %v1012
        %v1014 = vand.u32 %v869, 4294901760
        %v1015 = vsub.f32 %v869, %v1014
        %1016 = vmatmul.f32.gmra.mxu0 %v1015
        %v1017 = vpop.f32.mrf.mxu0
        %v1018 = vadd.f32 %v975, %v1017
        %1019 = vdwg.mxu0
        %1020 = vmatpush.msra.mxu0 0.0
        %1021 = vmatpush.msra.mxu0 0.0
        %1022 = vmatpush.msra.mxu0 0.0
        %1023 = vmatpush.msra.mxu0 0.0
        %1024 = vmatpush.msra.mxu0 0.0
        %1025 = vmatpush.msra.mxu0 0.0
        %1026 = vmatpush.msra.mxu0 0.0
        %1027 = vmatpush.msra.mxu0 0.0
        %v1028 = vand.u32 %v856, 4294901760
        %1029 = vmatpush.msra.mxu0 %v1028
        %v1030 = vand.u32 %v855, 4294901760
        %1031 = vmatpush.msra.mxu0 %v1030
        %v1032 = vand.u32 %v854, 4294901760
        %1033 = vmatpush.msra.mxu0 %v1032
        %v1034 = vand.u32 %v853, 4294901760
        %1035 = vmatpush.msra.mxu0 %v1034
        %v1036 = vand.u32 %v852, 4294901760
        %1037 = vmatpush.msra.mxu0 %v1036
        %v1038 = vand.u32 %v851, 4294901760
        %1039 = vmatpush.msra.mxu0 %v1038
        %v1040 = vand.u32 %v850, 4294901760
        %1041 = vmatpush.msra.mxu0 %v1040
        %v1042 = vand.u32 %v849, 4294901760
        %1043 = vmatpush.msra.mxu0 %v1042
        %v1044 = vand.u32 %v866, 4294901760
        %v1045 = vsub.f32 %v866, %v1044
        %v1046 = vand.u32 %v1045, 4294901760
        %1047 = vmatmul.f32.gmra.mxu0 %v1046
        %v1048 = vpop.f32.mrf.mxu0
        %v1049 = vadd.f32 %v1013, %v1048
        %v1050 = vand.u32 %v869, 4294901760
        %v1051 = vsub.f32 %v869, %v1050
        %v1052 = vand.u32 %v1051, 4294901760
        %1053 = vmatmul.f32.gmra.mxu0 %v1052
        %v1054 = vpop.f32.mrf.mxu0
        %v1055 = vadd.f32 %v1018, %v1054
        %1056 = vdwg.mxu0
        %1057 = vmatpush.msra.mxu0 0.0
        %1058 = vmatpush.msra.mxu0 0.0
        %1059 = vmatpush.msra.mxu0 0.0
        %1060 = vmatpush.msra.mxu0 0.0
        %1061 = vmatpush.msra.mxu0 0.0
        %1062 = vmatpush.msra.mxu0 0.0
        %1063 = vmatpush.msra.mxu0 0.0
        %1064 = vmatpush.msra.mxu0 0.0
        %v1065 = vand.u32 %v856, 4294901760
        %v1066 = vsub.f32 %v856, %v1065
        %v1067 = vand.u32 %v1066, 4294901760
        %1068 = vmatpush.msra.mxu0 %v1067
        %v1069 = vand.u32 %v855, 4294901760
        %v1070 = vsub.f32 %v855, %v1069
        %v1071 = vand.u32 %v1070, 4294901760
        %1072 = vmatpush.msra.mxu0 %v1071
        %v1073 = vand.u32 %v854, 4294901760
        %v1074 = vsub.f32 %v854, %v1073
        %v1075 = vand.u32 %v1074, 4294901760
        %1076 = vmatpush.msra.mxu0 %v1075
        %v1077 = vand.u32 %v853, 4294901760
        %v1078 = vsub.f32 %v853, %v1077
        %v1079 = vand.u32 %v1078, 4294901760
        %1080 = vmatpush.msra.mxu0 %v1079
        %v1081 = vand.u32 %v852, 4294901760
        %v1082 = vsub.f32 %v852, %v1081
        %v1083 = vand.u32 %v1082, 4294901760
        %1084 = vmatpush.msra.mxu0 %v1083
        %v1085 = vand.u32 %v851, 4294901760
        %v1086 = vsub.f32 %v851, %v1085
        %v1087 = vand.u32 %v1086, 4294901760
        %1088 = vmatpush.msra.mxu0 %v1087
        %v1089 = vand.u32 %v850, 4294901760
        %v1090 = vsub.f32 %v850, %v1089
        %v1091 = vand.u32 %v1090, 4294901760
        %1092 = vmatpush.msra.mxu0 %v1091
        %v1093 = vand.u32 %v849, 4294901760
        %v1094 = vsub.f32 %v849, %v1093
        %v1095 = vand.u32 %v1094, 4294901760
        %1096 = vmatpush.msra.mxu0 %v1095
        %v1097 = vand.u32 %v866, 4294901760
        %1098 = vmatmul.f32.gmra.mxu0 %v1097
        %v1099 = vpop.f32.mrf.mxu0
        %v1100 = vadd.f32 %v1049, %v1099
        %v1101 = vand.u32 %v869, 4294901760
        %1102 = vmatmul.f32.gmra.mxu0 %v1101
        %v1103 = vpop.f32.mrf.mxu0
        %v1104 = vadd.f32 %v1055, %v1103
        %1105 = vdwg.mxu0
        %1106 = vmatpush.msra.mxu0 0.0
        %1107 = vmatpush.msra.mxu0 0.0
        %1108 = vmatpush.msra.mxu0 0.0
        %1109 = vmatpush.msra.mxu0 0.0
        %1110 = vmatpush.msra.mxu0 0.0
        %1111 = vmatpush.msra.mxu0 0.0
        %1112 = vmatpush.msra.mxu0 0.0
        %1113 = vmatpush.msra.mxu0 0.0
        %v1114 = vand.u32 %v856, 4294901760
        %1115 = vmatpush.msra.mxu0 %v1114
        %v1116 = vand.u32 %v855, 4294901760
        %1117 = vmatpush.msra.mxu0 %v1116
        %v1118 = vand.u32 %v854, 4294901760
        %1119 = vmatpush.msra.mxu0 %v1118
        %v1120 = vand.u32 %v853, 4294901760
        %1121 = vmatpush.msra.mxu0 %v1120
        %v1122 = vand.u32 %v852, 4294901760
        %1123 = vmatpush.msra.mxu0 %v1122
        %v1124 = vand.u32 %v851, 4294901760
        %1125 = vmatpush.msra.mxu0 %v1124
        %v1126 = vand.u32 %v850, 4294901760
        %1127 = vmatpush.msra.mxu0 %v1126
        %v1128 = vand.u32 %v849, 4294901760
        %1129 = vmatpush.msra.mxu0 %v1128
        %v1130 = vand.u32 %v866, 4294901760
        %1131 = vmatmul.f32.gmra.mxu0 %v1130
        %v1132 = vpop.f32.mrf.mxu0
        %v1133 = vadd.f32 %v1100, %v1132
        %v1134 = vand.u32 %v869, 4294901760
        %1135 = vmatmul.f32.gmra.mxu0 %v1134
        %v1136 = vpop.f32.mrf.mxu0
        %v1137 = vadd.f32 %v1104, %v1136
        %1138 = vdwg.mxu0
        %v1140 = vsel %vm486, %v847, 0
        %v1143 = vsel %vm486, %v848, 0
        %1145 = vmatpush.msra.mxu0 0.0
        %1146 = vmatpush.msra.mxu0 0.0
        %1147 = vmatpush.msra.mxu0 0.0
        %1148 = vmatpush.msra.mxu0 0.0
        %1149 = vmatpush.msra.mxu0 0.0
        %1150 = vmatpush.msra.mxu0 0.0
        %1151 = vmatpush.msra.mxu0 0.0
        %1152 = vmatpush.msra.mxu0 0.0
        %v1153 = vand.u32 %v864, 4294901760
        %1154 = vmatpush.msra.mxu0 %v1153
        %v1155 = vand.u32 %v863, 4294901760
        %1156 = vmatpush.msra.mxu0 %v1155
        %v1157 = vand.u32 %v862, 4294901760
        %1158 = vmatpush.msra.mxu0 %v1157
        %v1159 = vand.u32 %v861, 4294901760
        %1160 = vmatpush.msra.mxu0 %v1159
        %v1161 = vand.u32 %v860, 4294901760
        %1162 = vmatpush.msra.mxu0 %v1161
        %v1163 = vand.u32 %v859, 4294901760
        %1164 = vmatpush.msra.mxu0 %v1163
        %v1165 = vand.u32 %v858, 4294901760
        %1166 = vmatpush.msra.mxu0 %v1165
        %v1167 = vand.u32 %v857, 4294901760
        %1168 = vmatpush.msra.mxu0 %v1167
        %v1169 = vand.u32 %v1140, 4294901760
        %v1170 = vsub.f32 %v1140, %v1169
        %v1171 = vand.u32 %v1170, 4294901760
        %v1172 = vsub.f32 %v1170, %v1171
        %v1173 = vand.u32 %v1172, 4294901760
        %1174 = vmatmul.f32.gmra.mxu0 %v1173
        %v1175 = vpop.f32.mrf.mxu0
        %v1176 = vadd.f32 0.0, %v1175
        %v1177 = vand.u32 %v1143, 4294901760
        %v1178 = vsub.f32 %v1143, %v1177
        %v1179 = vand.u32 %v1178, 4294901760
        %v1180 = vsub.f32 %v1178, %v1179
        %v1181 = vand.u32 %v1180, 4294901760
        %1182 = vmatmul.f32.gmra.mxu0 %v1181
        %v1183 = vpop.f32.mrf.mxu0
        %v1184 = vadd.f32 0.0, %v1183
        %1185 = vdwg.mxu0
        %1186 = vmatpush.msra.mxu0 0.0
        %1187 = vmatpush.msra.mxu0 0.0
        %1188 = vmatpush.msra.mxu0 0.0
        %1189 = vmatpush.msra.mxu0 0.0
        %1190 = vmatpush.msra.mxu0 0.0
        %1191 = vmatpush.msra.mxu0 0.0
        %1192 = vmatpush.msra.mxu0 0.0
        %1193 = vmatpush.msra.mxu0 0.0
        %v1194 = vand.u32 %v864, 4294901760
        %v1195 = vsub.f32 %v864, %v1194
        %v1196 = vand.u32 %v1195, 4294901760
        %v1197 = vsub.f32 %v1195, %v1196
        %v1198 = vand.u32 %v1197, 4294901760
        %1199 = vmatpush.msra.mxu0 %v1198
        %v1200 = vand.u32 %v863, 4294901760
        %v1201 = vsub.f32 %v863, %v1200
        %v1202 = vand.u32 %v1201, 4294901760
        %v1203 = vsub.f32 %v1201, %v1202
        %v1204 = vand.u32 %v1203, 4294901760
        %1205 = vmatpush.msra.mxu0 %v1204
        %v1206 = vand.u32 %v862, 4294901760
        %v1207 = vsub.f32 %v862, %v1206
        %v1208 = vand.u32 %v1207, 4294901760
        %v1209 = vsub.f32 %v1207, %v1208
        %v1210 = vand.u32 %v1209, 4294901760
        %1211 = vmatpush.msra.mxu0 %v1210
        %v1212 = vand.u32 %v861, 4294901760
        %v1213 = vsub.f32 %v861, %v1212
        %v1214 = vand.u32 %v1213, 4294901760
        %v1215 = vsub.f32 %v1213, %v1214
        %v1216 = vand.u32 %v1215, 4294901760
        %1217 = vmatpush.msra.mxu0 %v1216
        %v1218 = vand.u32 %v860, 4294901760
        %v1219 = vsub.f32 %v860, %v1218
        %v1220 = vand.u32 %v1219, 4294901760
        %v1221 = vsub.f32 %v1219, %v1220
        %v1222 = vand.u32 %v1221, 4294901760
        %1223 = vmatpush.msra.mxu0 %v1222
        %v1224 = vand.u32 %v859, 4294901760
        %v1225 = vsub.f32 %v859, %v1224
        %v1226 = vand.u32 %v1225, 4294901760
        %v1227 = vsub.f32 %v1225, %v1226
        %v1228 = vand.u32 %v1227, 4294901760
        %1229 = vmatpush.msra.mxu0 %v1228
        %v1230 = vand.u32 %v858, 4294901760
        %v1231 = vsub.f32 %v858, %v1230
        %v1232 = vand.u32 %v1231, 4294901760
        %v1233 = vsub.f32 %v1231, %v1232
        %v1234 = vand.u32 %v1233, 4294901760
        %1235 = vmatpush.msra.mxu0 %v1234
        %v1236 = vand.u32 %v857, 4294901760
        %v1237 = vsub.f32 %v857, %v1236
        %v1238 = vand.u32 %v1237, 4294901760
        %v1239 = vsub.f32 %v1237, %v1238
        %v1240 = vand.u32 %v1239, 4294901760
        %1241 = vmatpush.msra.mxu0 %v1240
        %v1242 = vand.u32 %v1140, 4294901760
        %1243 = vmatmul.f32.gmra.mxu0 %v1242
        %v1244 = vpop.f32.mrf.mxu0
        %v1245 = vadd.f32 %v1176, %v1244
        %v1246 = vand.u32 %v1143, 4294901760
        %1247 = vmatmul.f32.gmra.mxu0 %v1246
        %v1248 = vpop.f32.mrf.mxu0
        %v1249 = vadd.f32 %v1184, %v1248
        %1250 = vdwg.mxu0
        %1251 = vmatpush.msra.mxu0 0.0
        %1252 = vmatpush.msra.mxu0 0.0
        %1253 = vmatpush.msra.mxu0 0.0
        %1254 = vmatpush.msra.mxu0 0.0
        %1255 = vmatpush.msra.mxu0 0.0
        %1256 = vmatpush.msra.mxu0 0.0
        %1257 = vmatpush.msra.mxu0 0.0
        %1258 = vmatpush.msra.mxu0 0.0
        %v1259 = vand.u32 %v864, 4294901760
        %v1260 = vsub.f32 %v864, %v1259
        %1261 = vmatpush.msra.mxu0 %v1260
        %v1262 = vand.u32 %v863, 4294901760
        %v1263 = vsub.f32 %v863, %v1262
        %1264 = vmatpush.msra.mxu0 %v1263
        %v1265 = vand.u32 %v862, 4294901760
        %v1266 = vsub.f32 %v862, %v1265
        %1267 = vmatpush.msra.mxu0 %v1266
        %v1268 = vand.u32 %v861, 4294901760
        %v1269 = vsub.f32 %v861, %v1268
        %1270 = vmatpush.msra.mxu0 %v1269
        %v1271 = vand.u32 %v860, 4294901760
        %v1272 = vsub.f32 %v860, %v1271
        %1273 = vmatpush.msra.mxu0 %v1272
        %v1274 = vand.u32 %v859, 4294901760
        %v1275 = vsub.f32 %v859, %v1274
        %1276 = vmatpush.msra.mxu0 %v1275
        %v1277 = vand.u32 %v858, 4294901760
        %v1278 = vsub.f32 %v858, %v1277
        %1279 = vmatpush.msra.mxu0 %v1278
        %v1280 = vand.u32 %v857, 4294901760
        %v1281 = vsub.f32 %v857, %v1280
        %1282 = vmatpush.msra.mxu0 %v1281
        %v1283 = vand.u32 %v1140, 4294901760
        %v1284 = vsub.f32 %v1140, %v1283
        %1285 = vmatmul.f32.gmra.mxu0 %v1284
        %v1286 = vpop.f32.mrf.mxu0
        %v1287 = vadd.f32 %v1245, %v1286
        %v1288 = vand.u32 %v1143, 4294901760
        %v1289 = vsub.f32 %v1143, %v1288
        %1290 = vmatmul.f32.gmra.mxu0 %v1289
        %v1291 = vpop.f32.mrf.mxu0
        %v1292 = vadd.f32 %v1249, %v1291
        %1293 = vdwg.mxu0
        %1294 = vmatpush.msra.mxu0 0.0
        %1295 = vmatpush.msra.mxu0 0.0
        %1296 = vmatpush.msra.mxu0 0.0
        %1297 = vmatpush.msra.mxu0 0.0
        %1298 = vmatpush.msra.mxu0 0.0
        %1299 = vmatpush.msra.mxu0 0.0
        %1300 = vmatpush.msra.mxu0 0.0
        %1301 = vmatpush.msra.mxu0 0.0
        %v1302 = vand.u32 %v864, 4294901760
        %1303 = vmatpush.msra.mxu0 %v1302
        %v1304 = vand.u32 %v863, 4294901760
        %1305 = vmatpush.msra.mxu0 %v1304
        %v1306 = vand.u32 %v862, 4294901760
        %1307 = vmatpush.msra.mxu0 %v1306
        %v1308 = vand.u32 %v861, 4294901760
        %1309 = vmatpush.msra.mxu0 %v1308
        %v1310 = vand.u32 %v860, 4294901760
        %1311 = vmatpush.msra.mxu0 %v1310
        %v1312 = vand.u32 %v859, 4294901760
        %1313 = vmatpush.msra.mxu0 %v1312
        %v1314 = vand.u32 %v858, 4294901760
        %1315 = vmatpush.msra.mxu0 %v1314
        %v1316 = vand.u32 %v857, 4294901760
        %1317 = vmatpush.msra.mxu0 %v1316
        %v1318 = vand.u32 %v1140, 4294901760
        %v1319 = vsub.f32 %v1140, %v1318
        %v1320 = vand.u32 %v1319, 4294901760
        %1321 = vmatmul.f32.gmra.mxu0 %v1320
        %v1322 = vpop.f32.mrf.mxu0
        %v1323 = vadd.f32 %v1287, %v1322
        %v1324 = vand.u32 %v1143, 4294901760
        %v1325 = vsub.f32 %v1143, %v1324
        %v1326 = vand.u32 %v1325, 4294901760
        %1327 = vmatmul.f32.gmra.mxu0 %v1326
        %v1328 = vpop.f32.mrf.mxu0
        %v1329 = vadd.f32 %v1292, %v1328
        %1330 = vdwg.mxu0
        %1331 = vmatpush.msra.mxu0 0.0
        %1332 = vmatpush.msra.mxu0 0.0
        %1333 = vmatpush.msra.mxu0 0.0
        %1334 = vmatpush.msra.mxu0 0.0
        %1335 = vmatpush.msra.mxu0 0.0
        %1336 = vmatpush.msra.mxu0 0.0
        %1337 = vmatpush.msra.mxu0 0.0
        %1338 = vmatpush.msra.mxu0 0.0
        %v1339 = vand.u32 %v864, 4294901760
        %v1340 = vsub.f32 %v864, %v1339
        %v1341 = vand.u32 %v1340, 4294901760
        %1342 = vmatpush.msra.mxu0 %v1341
        %v1343 = vand.u32 %v863, 4294901760
        %v1344 = vsub.f32 %v863, %v1343
        %v1345 = vand.u32 %v1344, 4294901760
        %1346 = vmatpush.msra.mxu0 %v1345
        %v1347 = vand.u32 %v862, 4294901760
        %v1348 = vsub.f32 %v862, %v1347
        %v1349 = vand.u32 %v1348, 4294901760
        %1350 = vmatpush.msra.mxu0 %v1349
        %v1351 = vand.u32 %v861, 4294901760
        %v1352 = vsub.f32 %v861, %v1351
        %v1353 = vand.u32 %v1352, 4294901760
        %1354 = vmatpush.msra.mxu0 %v1353
        %v1355 = vand.u32 %v860, 4294901760
        %v1356 = vsub.f32 %v860, %v1355
        %v1357 = vand.u32 %v1356, 4294901760
        %1358 = vmatpush.msra.mxu0 %v1357
        %v1359 = vand.u32 %v859, 4294901760
        %v1360 = vsub.f32 %v859, %v1359
        %v1361 = vand.u32 %v1360, 4294901760
        %1362 = vmatpush.msra.mxu0 %v1361
        %v1363 = vand.u32 %v858, 4294901760
        %v1364 = vsub.f32 %v858, %v1363
        %v1365 = vand.u32 %v1364, 4294901760
        %1366 = vmatpush.msra.mxu0 %v1365
        %v1367 = vand.u32 %v857, 4294901760
        %v1368 = vsub.f32 %v857, %v1367
        %v1369 = vand.u32 %v1368, 4294901760
        %1370 = vmatpush.msra.mxu0 %v1369
        %v1371 = vand.u32 %v1140, 4294901760
        %1372 = vmatmul.f32.gmra.mxu0 %v1371
        %v1373 = vpop.f32.mrf.mxu0
        %v1374 = vadd.f32 %v1323, %v1373
        %v1375 = vand.u32 %v1143, 4294901760
        %1376 = vmatmul.f32.gmra.mxu0 %v1375
        %v1377 = vpop.f32.mrf.mxu0
        %v1378 = vadd.f32 %v1329, %v1377
        %1379 = vdwg.mxu0
        %1380 = vmatpush.msra.mxu0 0.0
        %1381 = vmatpush.msra.mxu0 0.0
        %1382 = vmatpush.msra.mxu0 0.0
        %1383 = vmatpush.msra.mxu0 0.0
        %1384 = vmatpush.msra.mxu0 0.0
        %1385 = vmatpush.msra.mxu0 0.0
        %1386 = vmatpush.msra.mxu0 0.0
        %1387 = vmatpush.msra.mxu0 0.0
        %v1388 = vand.u32 %v864, 4294901760
        %1389 = vmatpush.msra.mxu0 %v1388
        %v1390 = vand.u32 %v863, 4294901760
        %1391 = vmatpush.msra.mxu0 %v1390
        %v1392 = vand.u32 %v862, 4294901760
        %1393 = vmatpush.msra.mxu0 %v1392
        %v1394 = vand.u32 %v861, 4294901760
        %1395 = vmatpush.msra.mxu0 %v1394
        %v1396 = vand.u32 %v860, 4294901760
        %1397 = vmatpush.msra.mxu0 %v1396
        %v1398 = vand.u32 %v859, 4294901760
        %1399 = vmatpush.msra.mxu0 %v1398
        %v1400 = vand.u32 %v858, 4294901760
        %1401 = vmatpush.msra.mxu0 %v1400
        %v1402 = vand.u32 %v857, 4294901760
        %1403 = vmatpush.msra.mxu0 %v1402
        %v1404 = vand.u32 %v1140, 4294901760
        %1405 = vmatmul.f32.gmra.mxu0 %v1404
        %v1406 = vpop.f32.mrf.mxu0
        %v1407 = vadd.f32 %v1374, %v1406
        %v1408 = vand.u32 %v1143, 4294901760
        %1409 = vmatmul.f32.gmra.mxu0 %v1408
        %v1410 = vpop.f32.mrf.mxu0
        %v1411 = vadd.f32 %v1378, %v1410
        %1412 = vdwg.mxu0
        %1413 = vmax.xlane.f32.xlu0 %v1133
        %v1414 = vpop.xlane.xlu0 %1413
        %1415 = vmax.xlane.f32.xlu0 %v1137
        %v1416 = vpop.xlane.xlu0 %1415
        %1417 = vmax.xlane.f32.xlu0 %v1407
        %v1418 = vpop.xlane.xlu0 %1417
        %1419 = vmax.xlane.f32.xlu0 %v1411
        %v1420 = vpop.xlane.xlu0 %1419
        %v1421 = vsub.f32 %v1133, %v1414
        %v1422 = vsub.f32 %v1137, %v1416
        %v1423 = vsub.f32 %v1407, %v1418
        %v1424 = vsub.f32 %v1411, %v1420
        %v1425 = vmul.f32 %v1421, 1.442695
        %v1426 = vpow.pop %v1425
        %v1427 = vmul.f32 %v1422, 1.442695
        %v1428 = vpow.pop %v1427
        %v1429 = vmul.f32 %v1423, 1.442695
        %v1430 = vpow.pop %v1429
        %v1431 = vmul.f32 %v1424, 1.442695
        %v1432 = vpow.pop %v1431
        %1433 = vadd.xlane.f32.xlu0 %v1426
        %v1434 = vpop.xlane.xlu0 %1433
        %1435 = vadd.xlane.f32.xlu0 %v1428
        %v1436 = vpop.xlane.xlu0 %1435
        %1437 = vadd.xlane.f32.xlu0 %v1430
        %v1438 = vpop.xlane.xlu0 %1437
        %1439 = vadd.xlane.f32.xlu0 %v1432
        %v1440 = vpop.xlane.xlu0 %1439
        %v1441 = vrcp.pop %v1434
        %v1442 = vmul.f32 %v1434, %v1441
        %v1443 = vsub.f32 1.0, %v1442
        %v1444 = vmul.f32 %v1441, %v1443
        %v1445 = vadd.f32 %v1441, %v1444
        %vm1446 = vweird.f32 %v1434
        %vm1447 = vweird.f32 %v1441
        %vm1448 = vmor %vm1446, %vm1447
        %v1449 = vsel %vm1448, %v1441, %v1445
        %v1450 = vand.u32 2147483647, %v1434
        %vm1451 = vcmp.eq.f32.partialorder %v1450, 8.507059e+37
        %v1452 = vand.u32 %v1434, 2147483648
        %v1453 = vor.u32 1.1754944e-38, %v1452
        %v1454 = vsel %vm1451, %v1453, %v1449
        %v1455 = vmul.f32 %v1426, %v1454
        %v1456 = vrcp.pop %v1436
        %v1457 = vmul.f32 %v1436, %v1456
        %v1458 = vsub.f32 1.0, %v1457
        %v1459 = vmul.f32 %v1456, %v1458
        %v1460 = vadd.f32 %v1456, %v1459
        %vm1461 = vweird.f32 %v1436
        %vm1462 = vweird.f32 %v1456
        %vm1463 = vmor %vm1461, %vm1462
        %v1464 = vsel %vm1463, %v1456, %v1460
        %v1465 = vand.u32 2147483647, %v1436
        %vm1466 = vcmp.eq.f32.partialorder %v1465, 8.507059e+37
        %v1467 = vand.u32 %v1436, 2147483648
        %v1468 = vor.u32 1.1754944e-38, %v1467
        %v1469 = vsel %vm1466, %v1468, %v1464
        %v1470 = vmul.f32 %v1428, %v1469
        %v1471 = vrcp.pop %v1438
        %v1472 = vmul.f32 %v1438, %v1471
        %v1473 = vsub.f32 1.0, %v1472
        %v1474 = vmul.f32 %v1471, %v1473
        %v1475 = vadd.f32 %v1471, %v1474
        %vm1476 = vweird.f32 %v1438
        %vm1477 = vweird.f32 %v1471
        %vm1478 = vmor %vm1476, %vm1477
        %v1479 = vsel %vm1478, %v1471, %v1475
        %v1480 = vand.u32 2147483647, %v1438
        %vm1481 = vcmp.eq.f32.partialorder %v1480, 8.507059e+37
        %v1482 = vand.u32 %v1438, 2147483648
        %v1483 = vor.u32 1.1754944e-38, %v1482
        %v1484 = vsel %vm1481, %v1483, %v1479
        %v1485 = vmul.f32 %v1430, %v1484
        %v1486 = vrcp.pop %v1440
        %v1487 = vmul.f32 %v1440, %v1486
        %v1488 = vsub.f32 1.0, %v1487
        %v1489 = vmul.f32 %v1486, %v1488
        %v1490 = vadd.f32 %v1486, %v1489
        %vm1491 = vweird.f32 %v1440
        %vm1492 = vweird.f32 %v1486
        %vm1493 = vmor %vm1491, %vm1492
        %v1494 = vsel %vm1493, %v1486, %v1490
        %v1495 = vand.u32 2147483647, %v1440
        %vm1496 = vcmp.eq.f32.partialorder %v1495, 8.507059e+37
        %v1497 = vand.u32 %v1440, 2147483648
        %v1498 = vor.u32 1.1754944e-38, %v1497
        %v1499 = vsel %vm1496, %v1498, %v1494
        %v1500 = vmul.f32 %v1432, %v1499
        %1501 = vst [vmem:[%s431] sm:$0xff] %v1455
        %1502 = vst [vmem:[%s431 + $0x8] sm:$0xff] %v1470
        %1503 = vst [vmem:[%s431 + $0x10] sm:$0xff] %v1485
        %1504 = vst [vmem:[%s431 + $0x18] sm:$0xff] %v1500
        %v1505 = vld [vmem:[%s468] sm:$0xff]
        %v1506 = vld [vmem:[%s468 + $0x8] sm:$0xff]
        %v1507 = vld [vmem:[%s468 + $0x10] sm:$0xff]
        %v1508 = vld [vmem:[%s468 + $0x18] sm:$0xff]
        %v1509 = vld [vmem:[%s468 + $0x20] sm:$0xff]
        %v1510 = vld [vmem:[%s468 + $0x28] sm:$0xff]
        %v1511 = vld [vmem:[%s468 + $0x30] sm:$0xff]
        %v1512 = vld [vmem:[%s468 + $0x38] sm:$0xff]
        %v1513 = vld [vmem:[%s468 + $0x40] sm:$0xff]
        %v1514 = vld [vmem:[%s468 + $0x48] sm:$0xff]
        %v1515 = vld [vmem:[%s468 + $0x50] sm:$0xff]
        %v1516 = vld [vmem:[%s468 + $0x58] sm:$0xff]
        %v1517 = vld [vmem:[%s468 + $0x60] sm:$0xff]
        %v1518 = vld [vmem:[%s468 + $0x68] sm:$0xff]
        %v1519 = vld [vmem:[%s468 + $0x70] sm:$0xff]
        %v1520 = vld [vmem:[%s468 + $0x78] sm:$0xff]
        %v1521 = vld [vmem:[%s468 + $0x80] sm:$0xff]
        %v1522 = vld [vmem:[%s468 + $0x88] sm:$0xff]
        %v1523 = vld [vmem:[%s468 + $0x90] sm:$0xff]
        %v1524 = vld [vmem:[%s468 + $0x98] sm:$0xff]
        %v1525 = vld [vmem:[%s468 + $0xa0] sm:$0xff]
        %v1526 = vld [vmem:[%s468 + $0xa8] sm:$0xff]
        %v1527 = vld [vmem:[%s468 + $0xb0] sm:$0xff]
        %v1528 = vld [vmem:[%s468 + $0xb8] sm:$0xff]
        %v1529 = vld [vmem:[%s468 + $0xc0] sm:$0xff]
        %v1530 = vld [vmem:[%s468 + $0xc8] sm:$0xff]
        %v1531 = vld [vmem:[%s468 + $0xd0] sm:$0xff]
        %v1532 = vld [vmem:[%s468 + $0xd8] sm:$0xff]
        %v1533 = vld [vmem:[%s468 + $0xe0] sm:$0xff]
        %v1534 = vld [vmem:[%s468 + $0xe8] sm:$0xff]
        %v1535 = vld [vmem:[%s468 + $0xf0] sm:$0xff]
        %v1536 = vld [vmem:[%s468 + $0xf8] sm:$0xff]
        %v1537 = vand.u32 %v1520, 4294901760
        %1538 = vmatpush.msra.mxu0 %v1537
        %v1539 = vand.u32 %v1519, 4294901760
        %1540 = vmatpush.msra.mxu0 %v1539
        %v1541 = vand.u32 %v1518, 4294901760
        %1542 = vmatpush.msra.mxu0 %v1541
        %v1543 = vand.u32 %v1517, 4294901760
        %1544 = vmatpush.msra.mxu0 %v1543
        %v1545 = vand.u32 %v1516, 4294901760
        %1546 = vmatpush.msra.mxu0 %v1545
        %v1547 = vand.u32 %v1515, 4294901760
        %1548 = vmatpush.msra.mxu0 %v1547
        %v1549 = vand.u32 %v1514, 4294901760
        %1550 = vmatpush.msra.mxu0 %v1549
        %v1551 = vand.u32 %v1513, 4294901760
        %1552 = vmatpush.msra.mxu0 %v1551
        %v1553 = vand.u32 %v1512, 4294901760
        %1554 = vmatpush.msra.mxu0 %v1553
        %v1555 = vand.u32 %v1511, 4294901760
        %1556 = vmatpush.msra.mxu0 %v1555
        %v1557 = vand.u32 %v1510, 4294901760
        %1558 = vmatpush.msra.mxu0 %v1557
        %v1559 = vand.u32 %v1509, 4294901760
        %1560 = vmatpush.msra.mxu0 %v1559
        %v1561 = vand.u32 %v1508, 4294901760
        %1562 = vmatpush.msra.mxu0 %v1561
        %v1563 = vand.u32 %v1507, 4294901760
        %1564 = vmatpush.msra.mxu0 %v1563
        %v1565 = vand.u32 %v1506, 4294901760
        %1566 = vmatpush.msra.mxu0 %v1565
        %v1567 = vand.u32 %v1505, 4294901760
        %1568 = vmatpush.msra.mxu0 %v1567
        %v1569 = vand.u32 %v1455, 4294901760
        %v1570 = vsub.f32 %v1455, %v1569
        %v1571 = vand.u32 %v1570, 4294901760
        %v1572 = vsub.f32 %v1570, %v1571
        %v1573 = vand.u32 %v1572, 4294901760
        %1574 = vmatmul.f32.gmra.mxu0 %v1573
        %v1575 = vpop.f32.mrf.mxu0
        %v1576 = vadd.f32 0.0, %v1575
        %v1577 = vand.u32 %v1470, 4294901760
        %v1578 = vsub.f32 %v1470, %v1577
        %v1579 = vand.u32 %v1578, 4294901760
        %v1580 = vsub.f32 %v1578, %v1579
        %v1581 = vand.u32 %v1580, 4294901760
        %1582 = vmatmul.f32.gmra.mxu0 %v1581
        %v1583 = vpop.f32.mrf.mxu0
        %v1584 = vadd.f32 0.0, %v1583
        %1585 = vdwg.mxu0
        %v1586 = vand.u32 %v1520, 4294901760
        %v1587 = vsub.f32 %v1520, %v1586
        %v1588 = vand.u32 %v1587, 4294901760
        %v1589 = vsub.f32 %v1587, %v1588
        %v1590 = vand.u32 %v1589, 4294901760
        %1591 = vmatpush.msra.mxu0 %v1590
        %v1592 = vand.u32 %v1519, 4294901760
        %v1593 = vsub.f32 %v1519, %v1592
        %v1594 = vand.u32 %v1593, 4294901760
        %v1595 = vsub.f32 %v1593, %v1594
        %v1596 = vand.u32 %v1595, 4294901760
        %1597 = vmatpush.msra.mxu0 %v1596
        %v1598 = vand.u32 %v1518, 4294901760
        %v1599 = vsub.f32 %v1518, %v1598
        %v1600 = vand.u32 %v1599, 4294901760
        %v1601 = vsub.f32 %v1599, %v1600
        %v1602 = vand.u32 %v1601, 4294901760
        %1603 = vmatpush.msra.mxu0 %v1602
        %v1604 = vand.u32 %v1517, 4294901760
        %v1605 = vsub.f32 %v1517, %v1604
        %v1606 = vand.u32 %v1605, 4294901760
        %v1607 = vsub.f32 %v1605, %v1606
        %v1608 = vand.u32 %v1607, 4294901760
        %1609 = vmatpush.msra.mxu0 %v1608
        %v1610 = vand.u32 %v1516, 4294901760
        %v1611 = vsub.f32 %v1516, %v1610
        %v1612 = vand.u32 %v1611, 4294901760
        %v1613 = vsub.f32 %v1611, %v1612
        %v1614 = vand.u32 %v1613, 4294901760
        %1615 = vmatpush.msra.mxu0 %v1614
        %v1616 = vand.u32 %v1515, 4294901760
        %v1617 = vsub.f32 %v1515, %v1616
        %v1618 = vand.u32 %v1617, 4294901760
        %v1619 = vsub.f32 %v1617, %v1618
        %v1620 = vand.u32 %v1619, 4294901760
        %1621 = vmatpush.msra.mxu0 %v1620
        %v1622 = vand.u32 %v1514, 4294901760
        %v1623 = vsub.f32 %v1514, %v1622
        %v1624 = vand.u32 %v1623, 4294901760
        %v1625 = vsub.f32 %v1623, %v1624
        %v1626 = vand.u32 %v1625, 4294901760
        %1627 = vmatpush.msra.mxu0 %v1626
        %v1628 = vand.u32 %v1513, 4294901760
        %v1629 = vsub.f32 %v1513, %v1628
        %v1630 = vand.u32 %v1629, 4294901760
        %v1631 = vsub.f32 %v1629, %v1630
        %v1632 = vand.u32 %v1631, 4294901760
        %1633 = vmatpush.msra.mxu0 %v1632
        %v1634 = vand.u32 %v1512, 4294901760
        %v1635 = vsub.f32 %v1512, %v1634
        %v1636 = vand.u32 %v1635, 4294901760
        %v1637 = vsub.f32 %v1635, %v1636
        %v1638 = vand.u32 %v1637, 4294901760
        %1639 = vmatpush.msra.mxu0 %v1638
        %v1640 = vand.u32 %v1511, 4294901760
        %v1641 = vsub.f32 %v1511, %v1640
        %v1642 = vand.u32 %v1641, 4294901760
        %v1643 = vsub.f32 %v1641, %v1642
        %v1644 = vand.u32 %v1643, 4294901760
        %1645 = vmatpush.msra.mxu0 %v1644
        %v1646 = vand.u32 %v1510, 4294901760
        %v1647 = vsub.f32 %v1510, %v1646
        %v1648 = vand.u32 %v1647, 4294901760
        %v1649 = vsub.f32 %v1647, %v1648
        %v1650 = vand.u32 %v1649, 4294901760
        %1651 = vmatpush.msra.mxu0 %v1650
        %v1652 = vand.u32 %v1509, 4294901760
        %v1653 = vsub.f32 %v1509, %v1652
        %v1654 = vand.u32 %v1653, 4294901760
        %v1655 = vsub.f32 %v1653, %v1654
        %v1656 = vand.u32 %v1655, 4294901760
        %1657 = vmatpush.msra.mxu0 %v1656
        %v1658 = vand.u32 %v1508, 4294901760
        %v1659 = vsub.f32 %v1508, %v1658
        %v1660 = vand.u32 %v1659, 4294901760
        %v1661 = vsub.f32 %v1659, %v1660
        %v1662 = vand.u32 %v1661, 4294901760
        %1663 = vmatpush.msra.mxu0 %v1662
        %v1664 = vand.u32 %v1507, 4294901760
        %v1665 = vsub.f32 %v1507, %v1664
        %v1666 = vand.u32 %v1665, 4294901760
        %v1667 = vsub.f32 %v1665, %v1666
        %v1668 = vand.u32 %v1667, 4294901760
        %1669 = vmatpush.msra.mxu0 %v1668
        %v1670 = vand.u32 %v1506, 4294901760
        %v1671 = vsub.f32 %v1506, %v1670
        %v1672 = vand.u32 %v1671, 4294901760
        %v1673 = vsub.f32 %v1671, %v1672
        %v1674 = vand.u32 %v1673, 4294901760
        %1675 = vmatpush.msra.mxu0 %v1674
        %v1676 = vand.u32 %v1505, 4294901760
        %v1677 = vsub.f32 %v1505, %v1676
        %v1678 = vand.u32 %v1677, 4294901760
        %v1679 = vsub.f32 %v1677, %v1678
        %v1680 = vand.u32 %v1679, 4294901760
        %1681 = vmatpush.msra.mxu0 %v1680
        %v1682 = vand.u32 %v1455, 4294901760
        %1683 = vmatmul.f32.gmra.mxu0 %v1682
        %v1684 = vpop.f32.mrf.mxu0
        %v1685 = vadd.f32 %v1576, %v1684
        %v1686 = vand.u32 %v1470, 4294901760
        %1687 = vmatmul.f32.gmra.mxu0 %v1686
        %v1688 = vpop.f32.mrf.mxu0
        %v1689 = vadd.f32 %v1584, %v1688
        %1690 = vdwg.mxu0
        %v1691 = vand.u32 %v1520, 4294901760
        %v1692 = vsub.f32 %v1520, %v1691
        %1693 = vmatpush.msra.mxu0 %v1692
        %v1694 = vand.u32 %v1519, 4294901760
        %v1695 = vsub.f32 %v1519, %v1694
        %1696 = vmatpush.msra.mxu0 %v1695
        %v1697 = vand.u32 %v1518, 4294901760
        %v1698 = vsub.f32 %v1518, %v1697
        %1699 = vmatpush.msra.mxu0 %v1698
        %v1700 = vand.u32 %v1517, 4294901760
        %v1701 = vsub.f32 %v1517, %v1700
        %1702 = vmatpush.msra.mxu0 %v1701
        %v1703 = vand.u32 %v1516, 4294901760
        %v1704 = vsub.f32 %v1516, %v1703
        %1705 = vmatpush.msra.mxu0 %v1704
        %v1706 = vand.u32 %v1515, 4294901760
        %v1707 = vsub.f32 %v1515, %v1706
        %1708 = vmatpush.msra.mxu0 %v1707
        %v1709 = vand.u32 %v1514, 4294901760
        %v1710 = vsub.f32 %v1514, %v1709
        %1711 = vmatpush.msra.mxu0 %v1710
        %v1712 = vand.u32 %v1513, 4294901760
        %v1713 = vsub.f32 %v1513, %v1712
        %1714 = vmatpush.msra.mxu0 %v1713
        %v1715 = vand.u32 %v1512, 4294901760
        %v1716 = vsub.f32 %v1512, %v1715
        %1717 = vmatpush.msra.mxu0 %v1716
        %v1718 = vand.u32 %v1511, 4294901760
        %v1719 = vsub.f32 %v1511, %v1718
        %1720 = vmatpush.msra.mxu0 %v1719
        %v1721 = vand.u32 %v1510, 4294901760
        %v1722 = vsub.f32 %v1510, %v1721
        %1723 = vmatpush.msra.mxu0 %v1722
        %v1724 = vand.u32 %v1509, 4294901760
        %v1725 = vsub.f32 %v1509, %v1724
        %1726 = vmatpush.msra.mxu0 %v1725
        %v1727 = vand.u32 %v1508, 4294901760
        %v1728 = vsub.f32 %v1508, %v1727
        %1729 = vmatpush.msra.mxu0 %v1728
        %v1730 = vand.u32 %v1507, 4294901760
        %v1731 = vsub.f32 %v1507, %v1730
        %1732 = vmatpush.msra.mxu0 %v1731
        %v1733 = vand.u32 %v1506, 4294901760
        %v1734 = vsub.f32 %v1506, %v1733
        %1735 = vmatpush.msra.mxu0 %v1734
        %v1736 = vand.u32 %v1505, 4294901760
        %v1737 = vsub.f32 %v1505, %v1736
        %1738 = vmatpush.msra.mxu0 %v1737
        %v1739 = vand.u32 %v1455, 4294901760
        %v1740 = vsub.f32 %v1455, %v1739
        %1741 = vmatmul.f32.gmra.mxu0 %v1740
        %v1742 = vpop.f32.mrf.mxu0
        %v1743 = vadd.f32 %v1685, %v1742
        %v1744 = vand.u32 %v1470, 4294901760
        %v1745 = vsub.f32 %v1470, %v1744
        %1746 = vmatmul.f32.gmra.mxu0 %v1745
        %v1747 = vpop.f32.mrf.mxu0
        %v1748 = vadd.f32 %v1689, %v1747
        %1749 = vdwg.mxu0
        %v1750 = vand.u32 %v1520, 4294901760
        %1751 = vmatpush.msra.mxu0 %v1750
        %v1752 = vand.u32 %v1519, 4294901760
        %1753 = vmatpush.msra.mxu0 %v1752
        %v1754 = vand.u32 %v1518, 4294901760
        %1755 = vmatpush.msra.mxu0 %v1754
        %v1756 = vand.u32 %v1517, 4294901760
        %1757 = vmatpush.msra.mxu0 %v1756
        %v1758 = vand.u32 %v1516, 4294901760
        %1759 = vmatpush.msra.mxu0 %v1758
        %v1760 = vand.u32 %v1515, 4294901760
        %1761 = vmatpush.msra.mxu0 %v1760
        %v1762 = vand.u32 %v1514, 4294901760
        %1763 = vmatpush.msra.mxu0 %v1762
        %v1764 = vand.u32 %v1513, 4294901760
        %1765 = vmatpush.msra.mxu0 %v1764
        %v1766 = vand.u32 %v1512, 4294901760
        %1767 = vmatpush.msra.mxu0 %v1766
        %v1768 = vand.u32 %v1511, 4294901760
        %1769 = vmatpush.msra.mxu0 %v1768
        %v1770 = vand.u32 %v1510, 4294901760
        %1771 = vmatpush.msra.mxu0 %v1770
        %v1772 = vand.u32 %v1509, 4294901760
        %1773 = vmatpush.msra.mxu0 %v1772
        %v1774 = vand.u32 %v1508, 4294901760
        %1775 = vmatpush.msra.mxu0 %v1774
        %v1776 = vand.u32 %v1507, 4294901760
        %1777 = vmatpush.msra.mxu0 %v1776
        %v1778 = vand.u32 %v1506, 4294901760
        %1779 = vmatpush.msra.mxu0 %v1778
        %v1780 = vand.u32 %v1505, 4294901760
        %1781 = vmatpush.msra.mxu0 %v1780
        %v1782 = vand.u32 %v1455, 4294901760
        %v1783 = vsub.f32 %v1455, %v1782
        %v1784 = vand.u32 %v1783, 4294901760
        %1785 = vmatmul.f32.gmra.mxu0 %v1784
        %v1786 = vpop.f32.mrf.mxu0
        %v1787 = vadd.f32 %v1743, %v1786
        %v1788 = vand.u32 %v1470, 4294901760
        %v1789 = vsub.f32 %v1470, %v1788
        %v1790 = vand.u32 %v1789, 4294901760
        %1791 = vmatmul.f32.gmra.mxu0 %v1790
        %v1792 = vpop.f32.mrf.mxu0
        %v1793 = vadd.f32 %v1748, %v1792
        %1794 = vdwg.mxu0
        %v1795 = vand.u32 %v1520, 4294901760
        %v1796 = vsub.f32 %v1520, %v1795
        %v1797 = vand.u32 %v1796, 4294901760
        %1798 = vmatpush.msra.mxu0 %v1797
        %v1799 = vand.u32 %v1519, 4294901760
        %v1800 = vsub.f32 %v1519, %v1799
        %v1801 = vand.u32 %v1800, 4294901760
        %1802 = vmatpush.msra.mxu0 %v1801
        %v1803 = vand.u32 %v1518, 4294901760
        %v1804 = vsub.f32 %v1518, %v1803
        %v1805 = vand.u32 %v1804, 4294901760
        %1806 = vmatpush.msra.mxu0 %v1805
        %v1807 = vand.u32 %v1517, 4294901760
        %v1808 = vsub.f32 %v1517, %v1807
        %v1809 = vand.u32 %v1808, 4294901760
        %1810 = vmatpush.msra.mxu0 %v1809
        %v1811 = vand.u32 %v1516, 4294901760
        %v1812 = vsub.f32 %v1516, %v1811
        %v1813 = vand.u32 %v1812, 4294901760
        %1814 = vmatpush.msra.mxu0 %v1813
        %v1815 = vand.u32 %v1515, 4294901760
        %v1816 = vsub.f32 %v1515, %v1815
        %v1817 = vand.u32 %v1816, 4294901760
        %1818 = vmatpush.msra.mxu0 %v1817
        %v1819 = vand.u32 %v1514, 4294901760
        %v1820 = vsub.f32 %v1514, %v1819
        %v1821 = vand.u32 %v1820, 4294901760
        %1822 = vmatpush.msra.mxu0 %v1821
        %v1823 = vand.u32 %v1513, 4294901760
        %v1824 = vsub.f32 %v1513, %v1823
        %v1825 = vand.u32 %v1824, 4294901760
        %1826 = vmatpush.msra.mxu0 %v1825
        %v1827 = vand.u32 %v1512, 4294901760
        %v1828 = vsub.f32 %v1512, %v1827
        %v1829 = vand.u32 %v1828, 4294901760
        %1830 = vmatpush.msra.mxu0 %v1829
        %v1831 = vand.u32 %v1511, 4294901760
        %v1832 = vsub.f32 %v1511, %v1831
        %v1833 = vand.u32 %v1832, 4294901760
        %1834 = vmatpush.msra.mxu0 %v1833
        %v1835 = vand.u32 %v1510, 4294901760
        %v1836 = vsub.f32 %v1510, %v1835
        %v1837 = vand.u32 %v1836, 4294901760
        %1838 = vmatpush.msra.mxu0 %v1837
        %v1839 = vand.u32 %v1509, 4294901760
        %v1840 = vsub.f32 %v1509, %v1839
        %v1841 = vand.u32 %v1840, 4294901760
        %1842 = vmatpush.msra.mxu0 %v1841
        %v1843 = vand.u32 %v1508, 4294901760
        %v1844 = vsub.f32 %v1508, %v1843
        %v1845 = vand.u32 %v1844, 4294901760
        %1846 = vmatpush.msra.mxu0 %v1845
        %v1847 = vand.u32 %v1507, 4294901760
        %v1848 = vsub.f32 %v1507, %v1847
        %v1849 = vand.u32 %v1848, 4294901760
        %1850 = vmatpush.msra.mxu0 %v1849
        %v1851 = vand.u32 %v1506, 4294901760
        %v1852 = vsub.f32 %v1506, %v1851
        %v1853 = vand.u32 %v1852, 4294901760
        %1854 = vmatpush.msra.mxu0 %v1853
        %v1855 = vand.u32 %v1505, 4294901760
        %v1856 = vsub.f32 %v1505, %v1855
        %v1857 = vand.u32 %v1856, 4294901760
        %1858 = vmatpush.msra.mxu0 %v1857
        %v1859 = vand.u32 %v1455, 4294901760
        %1860 = vmatmul.f32.gmra.mxu0 %v1859
        %v1861 = vpop.f32.mrf.mxu0
        %v1862 = vadd.f32 %v1787, %v1861
        %v1863 = vand.u32 %v1470, 4294901760
        %1864 = vmatmul.f32.gmra.mxu0 %v1863
        %v1865 = vpop.f32.mrf.mxu0
        %v1866 = vadd.f32 %v1793, %v1865
        %1867 = vdwg.mxu0
        %v1868 = vand.u32 %v1520, 4294901760
        %1869 = vmatpush.msra.mxu0 %v1868
        %v1870 = vand.u32 %v1519, 4294901760
        %1871 = vmatpush.msra.mxu0 %v1870
        %v1872 = vand.u32 %v1518, 4294901760
        %1873 = vmatpush.msra.mxu0 %v1872
        %v1874 = vand.u32 %v1517, 4294901760
        %1875 = vmatpush.msra.mxu0 %v1874
        %v1876 = vand.u32 %v1516, 4294901760
        %1877 = vmatpush.msra.mxu0 %v1876
        %v1878 = vand.u32 %v1515, 4294901760
        %1879 = vmatpush.msra.mxu0 %v1878
        %v1880 = vand.u32 %v1514, 4294901760
        %1881 = vmatpush.msra.mxu0 %v1880
        %v1882 = vand.u32 %v1513, 4294901760
        %1883 = vmatpush.msra.mxu0 %v1882
        %v1884 = vand.u32 %v1512, 4294901760
        %1885 = vmatpush.msra.mxu0 %v1884
        %v1886 = vand.u32 %v1511, 4294901760
        %1887 = vmatpush.msra.mxu0 %v1886
        %v1888 = vand.u32 %v1510, 4294901760
        %1889 = vmatpush.msra.mxu0 %v1888
        %v1890 = vand.u32 %v1509, 4294901760
        %1891 = vmatpush.msra.mxu0 %v1890
        %v1892 = vand.u32 %v1508, 4294901760
        %1893 = vmatpush.msra.mxu0 %v1892
        %v1894 = vand.u32 %v1507, 4294901760
        %1895 = vmatpush.msra.mxu0 %v1894
        %v1896 = vand.u32 %v1506, 4294901760
        %1897 = vmatpush.msra.mxu0 %v1896
        %v1898 = vand.u32 %v1505, 4294901760
        %1899 = vmatpush.msra.mxu0 %v1898
        %v1900 = vand.u32 %v1455, 4294901760
        %1901 = vmatmul.f32.gmra.mxu0 %v1900
        %v1902 = vpop.f32.mrf.mxu0
        %v1903 = vadd.f32 %v1862, %v1902
        %v1904 = vand.u32 %v1470, 4294901760
        %1905 = vmatmul.f32.gmra.mxu0 %v1904
        %v1906 = vpop.f32.mrf.mxu0
        %v1907 = vadd.f32 %v1866, %v1906
        %1908 = vdwg.mxu0
        %v1909 = vand.u32 %v1536, 4294901760
        %1910 = vmatpush.msra.mxu0 %v1909
        %v1911 = vand.u32 %v1535, 4294901760
        %1912 = vmatpush.msra.mxu0 %v1911
        %v1913 = vand.u32 %v1534, 4294901760
        %1914 = vmatpush.msra.mxu0 %v1913
        %v1915 = vand.u32 %v1533, 4294901760
        %1916 = vmatpush.msra.mxu0 %v1915
        %v1917 = vand.u32 %v1532, 4294901760
        %1918 = vmatpush.msra.mxu0 %v1917
        %v1919 = vand.u32 %v1531, 4294901760
        %1920 = vmatpush.msra.mxu0 %v1919
        %v1921 = vand.u32 %v1530, 4294901760
        %1922 = vmatpush.msra.mxu0 %v1921
        %v1923 = vand.u32 %v1529, 4294901760
        %1924 = vmatpush.msra.mxu0 %v1923
        %v1925 = vand.u32 %v1528, 4294901760
        %1926 = vmatpush.msra.mxu0 %v1925
        %v1927 = vand.u32 %v1527, 4294901760
        %1928 = vmatpush.msra.mxu0 %v1927
        %v1929 = vand.u32 %v1526, 4294901760
        %1930 = vmatpush.msra.mxu0 %v1929
        %v1931 = vand.u32 %v1525, 4294901760
        %1932 = vmatpush.msra.mxu0 %v1931
        %v1933 = vand.u32 %v1524, 4294901760
        %1934 = vmatpush.msra.mxu0 %v1933
        %v1935 = vand.u32 %v1523, 4294901760
        %1936 = vmatpush.msra.mxu0 %v1935
        %v1937 = vand.u32 %v1522, 4294901760
        %1938 = vmatpush.msra.mxu0 %v1937
        %v1939 = vand.u32 %v1521, 4294901760
        %1940 = vmatpush.msra.mxu0 %v1939
        %v1941 = vand.u32 %v1485, 4294901760
        %v1942 = vsub.f32 %v1485, %v1941
        %v1943 = vand.u32 %v1942, 4294901760
        %v1944 = vsub.f32 %v1942, %v1943
        %v1945 = vand.u32 %v1944, 4294901760
        %1946 = vmatmul.f32.gmra.mxu0 %v1945
        %v1947 = vpop.f32.mrf.mxu0
        %v1948 = vadd.f32 0.0, %v1947
        %v1949 = vand.u32 %v1500, 4294901760
        %v1950 = vsub.f32 %v1500, %v1949
        %v1951 = vand.u32 %v1950, 4294901760
        %v1952 = vsub.f32 %v1950, %v1951
        %v1953 = vand.u32 %v1952, 4294901760
        %1954 = vmatmul.f32.gmra.mxu0 %v1953
        %v1955 = vpop.f32.mrf.mxu0
        %v1956 = vadd.f32 0.0, %v1955
        %1957 = vdwg.mxu0
        %v1958 = vand.u32 %v1536, 4294901760
        %v1959 = vsub.f32 %v1536, %v1958
        %v1960 = vand.u32 %v1959, 4294901760
        %v1961 = vsub.f32 %v1959, %v1960
        %v1962 = vand.u32 %v1961, 4294901760
        %1963 = vmatpush.msra.mxu0 %v1962
        %v1964 = vand.u32 %v1535, 4294901760
        %v1965 = vsub.f32 %v1535, %v1964
        %v1966 = vand.u32 %v1965, 4294901760
        %v1967 = vsub.f32 %v1965, %v1966
        %v1968 = vand.u32 %v1967, 4294901760
        %1969 = vmatpush.msra.mxu0 %v1968
        %v1970 = vand.u32 %v1534, 4294901760
        %v1971 = vsub.f32 %v1534, %v1970
        %v1972 = vand.u32 %v1971, 4294901760
        %v1973 = vsub.f32 %v1971, %v1972
        %v1974 = vand.u32 %v1973, 4294901760
        %1975 = vmatpush.msra.mxu0 %v1974
        %v1976 = vand.u32 %v1533, 4294901760
        %v1977 = vsub.f32 %v1533, %v1976
        %v1978 = vand.u32 %v1977, 4294901760
        %v1979 = vsub.f32 %v1977, %v1978
        %v1980 = vand.u32 %v1979, 4294901760
        %1981 = vmatpush.msra.mxu0 %v1980
        %v1982 = vand.u32 %v1532, 4294901760
        %v1983 = vsub.f32 %v1532, %v1982
        %v1984 = vand.u32 %v1983, 4294901760
        %v1985 = vsub.f32 %v1983, %v1984
        %v1986 = vand.u32 %v1985, 4294901760
        %1987 = vmatpush.msra.mxu0 %v1986
        %v1988 = vand.u32 %v1531, 4294901760
        %v1989 = vsub.f32 %v1531, %v1988
        %v1990 = vand.u32 %v1989, 4294901760
        %v1991 = vsub.f32 %v1989, %v1990
        %v1992 = vand.u32 %v1991, 4294901760
        %1993 = vmatpush.msra.mxu0 %v1992
        %v1994 = vand.u32 %v1530, 4294901760
        %v1995 = vsub.f32 %v1530, %v1994
        %v1996 = vand.u32 %v1995, 4294901760
        %v1997 = vsub.f32 %v1995, %v1996
        %v1998 = vand.u32 %v1997, 4294901760
        %1999 = vmatpush.msra.mxu0 %v1998
        %v2000 = vand.u32 %v1529, 4294901760
        %v2001 = vsub.f32 %v1529, %v2000
        %v2002 = vand.u32 %v2001, 4294901760
        %v2003 = vsub.f32 %v2001, %v2002
        %v2004 = vand.u32 %v2003, 4294901760
        %2005 = vmatpush.msra.mxu0 %v2004
        %v2006 = vand.u32 %v1528, 4294901760
        %v2007 = vsub.f32 %v1528, %v2006
        %v2008 = vand.u32 %v2007, 4294901760
        %v2009 = vsub.f32 %v2007, %v2008
        %v2010 = vand.u32 %v2009, 4294901760
        %2011 = vmatpush.msra.mxu0 %v2010
        %v2012 = vand.u32 %v1527, 4294901760
        %v2013 = vsub.f32 %v1527, %v2012
        %v2014 = vand.u32 %v2013, 4294901760
        %v2015 = vsub.f32 %v2013, %v2014
        %v2016 = vand.u32 %v2015, 4294901760
        %2017 = vmatpush.msra.mxu0 %v2016
        %v2018 = vand.u32 %v1526, 4294901760
        %v2019 = vsub.f32 %v1526, %v2018
        %v2020 = vand.u32 %v2019, 4294901760
        %v2021 = vsub.f32 %v2019, %v2020
        %v2022 = vand.u32 %v2021, 4294901760
        %2023 = vmatpush.msra.mxu0 %v2022
        %v2024 = vand.u32 %v1525, 4294901760
        %v2025 = vsub.f32 %v1525, %v2024
        %v2026 = vand.u32 %v2025, 4294901760
        %v2027 = vsub.f32 %v2025, %v2026
        %v2028 = vand.u32 %v2027, 4294901760
        %2029 = vmatpush.msra.mxu0 %v2028
        %v2030 = vand.u32 %v1524, 4294901760
        %v2031 = vsub.f32 %v1524, %v2030
        %v2032 = vand.u32 %v2031, 4294901760
        %v2033 = vsub.f32 %v2031, %v2032
        %v2034 = vand.u32 %v2033, 4294901760
        %2035 = vmatpush.msra.mxu0 %v2034
        %v2036 = vand.u32 %v1523, 4294901760
        %v2037 = vsub.f32 %v1523, %v2036
        %v2038 = vand.u32 %v2037, 4294901760
        %v2039 = vsub.f32 %v2037, %v2038
        %v2040 = vand.u32 %v2039, 4294901760
        %2041 = vmatpush.msra.mxu0 %v2040
        %v2042 = vand.u32 %v1522, 4294901760
        %v2043 = vsub.f32 %v1522, %v2042
        %v2044 = vand.u32 %v2043, 4294901760
        %v2045 = vsub.f32 %v2043, %v2044
        %v2046 = vand.u32 %v2045, 4294901760
        %2047 = vmatpush.msra.mxu0 %v2046
        %v2048 = vand.u32 %v1521, 4294901760
        %v2049 = vsub.f32 %v1521, %v2048
        %v2050 = vand.u32 %v2049, 4294901760
        %v2051 = vsub.f32 %v2049, %v2050
        %v2052 = vand.u32 %v2051, 4294901760
        %2053 = vmatpush.msra.mxu0 %v2052
        %v2054 = vand.u32 %v1485, 4294901760
        %2055 = vmatmul.f32.gmra.mxu0 %v2054
        %v2056 = vpop.f32.mrf.mxu0
        %v2057 = vadd.f32 %v1948, %v2056
        %v2058 = vand.u32 %v1500, 4294901760
        %2059 = vmatmul.f32.gmra.mxu0 %v2058
        %v2060 = vpop.f32.mrf.mxu0
        %v2061 = vadd.f32 %v1956, %v2060
        %2062 = vdwg.mxu0
        %v2063 = vand.u32 %v1536, 4294901760
        %v2064 = vsub.f32 %v1536, %v2063
        %2065 = vmatpush.msra.mxu0 %v2064
        %v2066 = vand.u32 %v1535, 4294901760
        %v2067 = vsub.f32 %v1535, %v2066
        %2068 = vmatpush.msra.mxu0 %v2067
        %v2069 = vand.u32 %v1534, 4294901760
        %v2070 = vsub.f32 %v1534, %v2069
        %2071 = vmatpush.msra.mxu0 %v2070
        %v2072 = vand.u32 %v1533, 4294901760
        %v2073 = vsub.f32 %v1533, %v2072
        %2074 = vmatpush.msra.mxu0 %v2073
        %v2075 = vand.u32 %v1532, 4294901760
        %v2076 = vsub.f32 %v1532, %v2075
        %2077 = vmatpush.msra.mxu0 %v2076
        %v2078 = vand.u32 %v1531, 4294901760
        %v2079 = vsub.f32 %v1531, %v2078
        %2080 = vmatpush.msra.mxu0 %v2079
        %v2081 = vand.u32 %v1530, 4294901760
        %v2082 = vsub.f32 %v1530, %v2081
        %2083 = vmatpush.msra.mxu0 %v2082
        %v2084 = vand.u32 %v1529, 4294901760
        %v2085 = vsub.f32 %v1529, %v2084
        %2086 = vmatpush.msra.mxu0 %v2085
        %v2087 = vand.u32 %v1528, 4294901760
        %v2088 = vsub.f32 %v1528, %v2087
        %2089 = vmatpush.msra.mxu0 %v2088
        %v2090 = vand.u32 %v1527, 4294901760
        %v2091 = vsub.f32 %v1527, %v2090
        %2092 = vmatpush.msra.mxu0 %v2091
        %v2093 = vand.u32 %v1526, 4294901760
        %v2094 = vsub.f32 %v1526, %v2093
        %2095 = vmatpush.msra.mxu0 %v2094
        %v2096 = vand.u32 %v1525, 4294901760
        %v2097 = vsub.f32 %v1525, %v2096
        %2098 = vmatpush.msra.mxu0 %v2097
        %v2099 = vand.u32 %v1524, 4294901760
        %v2100 = vsub.f32 %v1524, %v2099
        %2101 = vmatpush.msra.mxu0 %v2100
        %v2102 = vand.u32 %v1523, 4294901760
        %v2103 = vsub.f32 %v1523, %v2102
        %2104 = vmatpush.msra.mxu0 %v2103
        %v2105 = vand.u32 %v1522, 4294901760
        %v2106 = vsub.f32 %v1522, %v2105
        %2107 = vmatpush.msra.mxu0 %v2106
        %v2108 = vand.u32 %v1521, 4294901760
        %v2109 = vsub.f32 %v1521, %v2108
        %2110 = vmatpush.msra.mxu0 %v2109
        %v2111 = vand.u32 %v1485, 4294901760
        %v2112 = vsub.f32 %v1485, %v2111
        %2113 = vmatmul.f32.gmra.mxu0 %v2112
        %v2114 = vpop.f32.mrf.mxu0
        %v2115 = vadd.f32 %v2057, %v2114
        %v2116 = vand.u32 %v1500, 4294901760
        %v2117 = vsub.f32 %v1500, %v2116
        %2118 = vmatmul.f32.gmra.mxu0 %v2117
        %v2119 = vpop.f32.mrf.mxu0
        %v2120 = vadd.f32 %v2061, %v2119
        %2121 = vdwg.mxu0
        %v2122 = vand.u32 %v1536, 4294901760
        %2123 = vmatpush.msra.mxu0 %v2122
        %v2124 = vand.u32 %v1535, 4294901760
        %2125 = vmatpush.msra.mxu0 %v2124
        %v2126 = vand.u32 %v1534, 4294901760
        %2127 = vmatpush.msra.mxu0 %v2126
        %v2128 = vand.u32 %v1533, 4294901760
        %2129 = vmatpush.msra.mxu0 %v2128
        %v2130 = vand.u32 %v1532, 4294901760
        %2131 = vmatpush.msra.mxu0 %v2130
        %v2132 = vand.u32 %v1531, 4294901760
        %2133 = vmatpush.msra.mxu0 %v2132
        %v2134 = vand.u32 %v1530, 4294901760
        %2135 = vmatpush.msra.mxu0 %v2134
        %v2136 = vand.u32 %v1529, 4294901760
        %2137 = vmatpush.msra.mxu0 %v2136
        %v2138 = vand.u32 %v1528, 4294901760
        %2139 = vmatpush.msra.mxu0 %v2138
        %v2140 = vand.u32 %v1527, 4294901760
        %2141 = vmatpush.msra.mxu0 %v2140
        %v2142 = vand.u32 %v1526, 4294901760
        %2143 = vmatpush.msra.mxu0 %v2142
        %v2144 = vand.u32 %v1525, 4294901760
        %2145 = vmatpush.msra.mxu0 %v2144
        %v2146 = vand.u32 %v1524, 4294901760
        %2147 = vmatpush.msra.mxu0 %v2146
        %v2148 = vand.u32 %v1523, 4294901760
        %2149 = vmatpush.msra.mxu0 %v2148
        %v2150 = vand.u32 %v1522, 4294901760
        %2151 = vmatpush.msra.mxu0 %v2150
        %v2152 = vand.u32 %v1521, 4294901760
        %2153 = vmatpush.msra.mxu0 %v2152
        %v2154 = vand.u32 %v1485, 4294901760
        %v2155 = vsub.f32 %v1485, %v2154
        %v2156 = vand.u32 %v2155, 4294901760
        %2157 = vmatmul.f32.gmra.mxu0 %v2156
        %v2158 = vpop.f32.mrf.mxu0
        %v2159 = vadd.f32 %v2115, %v2158
        %v2160 = vand.u32 %v1500, 4294901760
        %v2161 = vsub.f32 %v1500, %v2160
        %v2162 = vand.u32 %v2161, 4294901760
        %2163 = vmatmul.f32.gmra.mxu0 %v2162
        %v2164 = vpop.f32.mrf.mxu0
        %v2165 = vadd.f32 %v2120, %v2164
        %2166 = vdwg.mxu0
        %v2167 = vand.u32 %v1536, 4294901760
        %v2168 = vsub.f32 %v1536, %v2167
        %v2169 = vand.u32 %v2168, 4294901760
        %2170 = vmatpush.msra.mxu0 %v2169
        %v2171 = vand.u32 %v1535, 4294901760
        %v2172 = vsub.f32 %v1535, %v2171
        %v2173 = vand.u32 %v2172, 4294901760
        %2174 = vmatpush.msra.mxu0 %v2173
        %v2175 = vand.u32 %v1534, 4294901760
        %v2176 = vsub.f32 %v1534, %v2175
        %v2177 = vand.u32 %v2176, 4294901760
        %2178 = vmatpush.msra.mxu0 %v2177
        %v2179 = vand.u32 %v1533, 4294901760
        %v2180 = vsub.f32 %v1533, %v2179
        %v2181 = vand.u32 %v2180, 4294901760
        %2182 = vmatpush.msra.mxu0 %v2181
        %v2183 = vand.u32 %v1532, 4294901760
        %v2184 = vsub.f32 %v1532, %v2183
        %v2185 = vand.u32 %v2184, 4294901760
        %2186 = vmatpush.msra.mxu0 %v2185
        %v2187 = vand.u32 %v1531, 4294901760
        %v2188 = vsub.f32 %v1531, %v2187
        %v2189 = vand.u32 %v2188, 4294901760
        %2190 = vmatpush.msra.mxu0 %v2189
        %v2191 = vand.u32 %v1530, 4294901760
        %v2192 = vsub.f32 %v1530, %v2191
        %v2193 = vand.u32 %v2192, 4294901760
        %2194 = vmatpush.msra.mxu0 %v2193
        %v2195 = vand.u32 %v1529, 4294901760
        %v2196 = vsub.f32 %v1529, %v2195
        %v2197 = vand.u32 %v2196, 4294901760
        %2198 = vmatpush.msra.mxu0 %v2197
        %v2199 = vand.u32 %v1528, 4294901760
        %v2200 = vsub.f32 %v1528, %v2199
        %v2201 = vand.u32 %v2200, 4294901760
        %2202 = vmatpush.msra.mxu0 %v2201
        %v2203 = vand.u32 %v1527, 4294901760
        %v2204 = vsub.f32 %v1527, %v2203
        %v2205 = vand.u32 %v2204, 4294901760
        %2206 = vmatpush.msra.mxu0 %v2205
        %v2207 = vand.u32 %v1526, 4294901760
        %v2208 = vsub.f32 %v1526, %v2207
        %v2209 = vand.u32 %v2208, 4294901760
        %2210 = vmatpush.msra.mxu0 %v2209
        %v2211 = vand.u32 %v1525, 4294901760
        %v2212 = vsub.f32 %v1525, %v2211
        %v2213 = vand.u32 %v2212, 4294901760
        %2214 = vmatpush.msra.mxu0 %v2213
        %v2215 = vand.u32 %v1524, 4294901760
        %v2216 = vsub.f32 %v1524, %v2215
        %v2217 = vand.u32 %v2216, 4294901760
        %2218 = vmatpush.msra.mxu0 %v2217
        %v2219 = vand.u32 %v1523, 4294901760
        %v2220 = vsub.f32 %v1523, %v2219
        %v2221 = vand.u32 %v2220, 4294901760
        %2222 = vmatpush.msra.mxu0 %v2221
        %v2223 = vand.u32 %v1522, 4294901760
        %v2224 = vsub.f32 %v1522, %v2223
        %v2225 = vand.u32 %v2224, 4294901760
        %2226 = vmatpush.msra.mxu0 %v2225
        %v2227 = vand.u32 %v1521, 4294901760
        %v2228 = vsub.f32 %v1521, %v2227
        %v2229 = vand.u32 %v2228, 4294901760
        %2230 = vmatpush.msra.mxu0 %v2229
        %v2231 = vand.u32 %v1485, 4294901760
        %2232 = vmatmul.f32.gmra.mxu0 %v2231
        %v2233 = vpop.f32.mrf.mxu0
        %v2234 = vadd.f32 %v2159, %v2233
        %v2235 = vand.u32 %v1500, 4294901760
        %2236 = vmatmul.f32.gmra.mxu0 %v2235
        %v2237 = vpop.f32.mrf.mxu0
        %v2238 = vadd.f32 %v2165, %v2237
        %2239 = vdwg.mxu0
        %v2240 = vand.u32 %v1536, 4294901760
        %2241 = vmatpush.msra.mxu0 %v2240
        %v2242 = vand.u32 %v1535, 4294901760
        %2243 = vmatpush.msra.mxu0 %v2242
        %v2244 = vand.u32 %v1534, 4294901760
        %2245 = vmatpush.msra.mxu0 %v2244
        %v2246 = vand.u32 %v1533, 4294901760
        %2247 = vmatpush.msra.mxu0 %v2246
        %v2248 = vand.u32 %v1532, 4294901760
        %2249 = vmatpush.msra.mxu0 %v2248
        %v2250 = vand.u32 %v1531, 4294901760
        %2251 = vmatpush.msra.mxu0 %v2250
        %v2252 = vand.u32 %v1530, 4294901760
        %2253 = vmatpush.msra.mxu0 %v2252
        %v2254 = vand.u32 %v1529, 4294901760
        %2255 = vmatpush.msra.mxu0 %v2254
        %v2256 = vand.u32 %v1528, 4294901760
        %2257 = vmatpush.msra.mxu0 %v2256
        %v2258 = vand.u32 %v1527, 4294901760
        %2259 = vmatpush.msra.mxu0 %v2258
        %v2260 = vand.u32 %v1526, 4294901760
        %2261 = vmatpush.msra.mxu0 %v2260
        %v2262 = vand.u32 %v1525, 4294901760
        %2263 = vmatpush.msra.mxu0 %v2262
        %v2264 = vand.u32 %v1524, 4294901760
        %2265 = vmatpush.msra.mxu0 %v2264
        %v2266 = vand.u32 %v1523, 4294901760
        %2267 = vmatpush.msra.mxu0 %v2266
        %v2268 = vand.u32 %v1522, 4294901760
        %2269 = vmatpush.msra.mxu0 %v2268
        %v2270 = vand.u32 %v1521, 4294901760
        %2271 = vmatpush.msra.mxu0 %v2270
        %v2272 = vand.u32 %v1485, 4294901760
        %2273 = vmatmul.f32.gmra.mxu0 %v2272
        %v2274 = vpop.f32.mrf.mxu0
        %v2275 = vadd.f32 %v2234, %v2274
        %v2276 = vand.u32 %v1500, 4294901760
        %2277 = vmatmul.f32.gmra.mxu0 %v2276
        %v2278 = vpop.f32.mrf.mxu0
        %v2279 = vadd.f32 %v2238, %v2278
        %2280 = vdwg.mxu0
        %v2281 = vld [vmem:[%s6] sm:$0xff]
        %v2282 = vld [vmem:[%s6 + $0x8] sm:$0xff]
        %v2283 = vld [vmem:[%s6 + $0x10] sm:$0xff]
        %v2284 = vld [vmem:[%s6 + $0x18] sm:$0xff]
        %v2285 = vld [vmem:[%s6 + $0x20] sm:$0xff]
        %v2286 = vld [vmem:[%s6 + $0x28] sm:$0xff]
        %v2287 = vld [vmem:[%s6 + $0x30] sm:$0xff]
        %v2288 = vld [vmem:[%s6 + $0x38] sm:$0xff]
        %v2290 = vsel %vm486, %v1903, 0
        %v2293 = vsel %vm486, %v1907, 0
        %v2296 = vsel %vm486, %v2275, 0
        %v2299 = vsel %vm486, %v2279, 0
        %2301 = vmatpush.msra.mxu0 0.0
        %2302 = vmatpush.msra.mxu0 0.0
        %2303 = vmatpush.msra.mxu0 0.0
        %2304 = vmatpush.msra.mxu0 0.0
        %2305 = vmatpush.msra.mxu0 0.0
        %2306 = vmatpush.msra.mxu0 0.0
        %2307 = vmatpush.msra.mxu0 0.0
        %2308 = vmatpush.msra.mxu0 0.0
        %v2309 = vand.u32 %v2288, 4294901760
        %2310 = vmatpush.msra.mxu0 %v2309
        %v2311 = vand.u32 %v2287, 4294901760
        %2312 = vmatpush.msra.mxu0 %v2311
        %v2313 = vand.u32 %v2286, 4294901760
        %2314 = vmatpush.msra.mxu0 %v2313
        %v2315 = vand.u32 %v2285, 4294901760
        %2316 = vmatpush.msra.mxu0 %v2315
        %v2317 = vand.u32 %v2284, 4294901760
        %2318 = vmatpush.msra.mxu0 %v2317
        %v2319 = vand.u32 %v2283, 4294901760
        %2320 = vmatpush.msra.mxu0 %v2319
        %v2321 = vand.u32 %v2282, 4294901760
        %2322 = vmatpush.msra.mxu0 %v2321
        %v2323 = vand.u32 %v2281, 4294901760
        %2324 = vmatpush.msra.mxu0 %v2323
        %v2325 = vand.u32 %v2290, 4294901760
        %v2326 = vsub.f32 %v2290, %v2325
        %v2327 = vand.u32 %v2326, 4294901760
        %v2328 = vsub.f32 %v2326, %v2327
        %v2329 = vand.u32 %v2328, 4294901760
        %2330 = vmatmul.f32.gmra.mxu0 %v2329
        %v2331 = vpop.f32.mrf.mxu0
        %v2332 = vadd.f32 0.0, %v2331
        %v2333 = vand.u32 %v2293, 4294901760
        %v2334 = vsub.f32 %v2293, %v2333
        %v2335 = vand.u32 %v2334, 4294901760
        %v2336 = vsub.f32 %v2334, %v2335
        %v2337 = vand.u32 %v2336, 4294901760
        %2338 = vmatmul.f32.gmra.mxu0 %v2337
        %v2339 = vpop.f32.mrf.mxu0
        %v2340 = vadd.f32 0.0, %v2339
        %v2341 = vand.u32 %v2296, 4294901760
        %v2342 = vsub.f32 %v2296, %v2341
        %v2343 = vand.u32 %v2342, 4294901760
        %v2344 = vsub.f32 %v2342, %v2343
        %v2345 = vand.u32 %v2344, 4294901760
        %2346 = vmatmul.f32.gmra.mxu0 %v2345
        %v2347 = vpop.f32.mrf.mxu0
        %v2348 = vadd.f32 0.0, %v2347
        %v2349 = vand.u32 %v2299, 4294901760
        %v2350 = vsub.f32 %v2299, %v2349
        %v2351 = vand.u32 %v2350, 4294901760
        %v2352 = vsub.f32 %v2350, %v2351
        %v2353 = vand.u32 %v2352, 4294901760
        %2354 = vmatmul.f32.gmra.mxu0 %v2353
        %v2355 = vpop.f32.mrf.mxu0
        %v2356 = vadd.f32 0.0, %v2355
        %2357 = vdwg.mxu0
        %2358 = vmatpush.msra.mxu0 0.0
        %2359 = vmatpush.msra.mxu0 0.0
        %2360 = vmatpush.msra.mxu0 0.0
        %2361 = vmatpush.msra.mxu0 0.0
        %2362 = vmatpush.msra.mxu0 0.0
        %2363 = vmatpush.msra.mxu0 0.0
        %2364 = vmatpush.msra.mxu0 0.0
        %2365 = vmatpush.msra.mxu0 0.0
        %v2366 = vand.u32 %v2288, 4294901760
        %v2367 = vsub.f32 %v2288, %v2366
        %v2368 = vand.u32 %v2367, 4294901760
        %v2369 = vsub.f32 %v2367, %v2368
        %v2370 = vand.u32 %v2369, 4294901760
        %2371 = vmatpush.msra.mxu0 %v2370
        %v2372 = vand.u32 %v2287, 4294901760
        %v2373 = vsub.f32 %v2287, %v2372
        %v2374 = vand.u32 %v2373, 4294901760
        %v2375 = vsub.f32 %v2373, %v2374
        %v2376 = vand.u32 %v2375, 4294901760
        %2377 = vmatpush.msra.mxu0 %v2376
        %v2378 = vand.u32 %v2286, 4294901760
        %v2379 = vsub.f32 %v2286, %v2378
        %v2380 = vand.u32 %v2379, 4294901760
        %v2381 = vsub.f32 %v2379, %v2380
        %v2382 = vand.u32 %v2381, 4294901760
        %2383 = vmatpush.msra.mxu0 %v2382
        %v2384 = vand.u32 %v2285, 4294901760
        %v2385 = vsub.f32 %v2285, %v2384
        %v2386 = vand.u32 %v2385, 4294901760
        %v2387 = vsub.f32 %v2385, %v2386
        %v2388 = vand.u32 %v2387, 4294901760
        %2389 = vmatpush.msra.mxu0 %v2388
        %v2390 = vand.u32 %v2284, 4294901760
        %v2391 = vsub.f32 %v2284, %v2390
        %v2392 = vand.u32 %v2391, 4294901760
        %v2393 = vsub.f32 %v2391, %v2392
        %v2394 = vand.u32 %v2393, 4294901760
        %2395 = vmatpush.msra.mxu0 %v2394
        %v2396 = vand.u32 %v2283, 4294901760
        %v2397 = vsub.f32 %v2283, %v2396
        %v2398 = vand.u32 %v2397, 4294901760
        %v2399 = vsub.f32 %v2397, %v2398
        %v2400 = vand.u32 %v2399, 4294901760
        %2401 = vmatpush.msra.mxu0 %v2400
        %v2402 = vand.u32 %v2282, 4294901760
        %v2403 = vsub.f32 %v2282, %v2402
        %v2404 = vand.u32 %v2403, 4294901760
        %v2405 = vsub.f32 %v2403, %v2404
        %v2406 = vand.u32 %v2405, 4294901760
        %2407 = vmatpush.msra.mxu0 %v2406
        %v2408 = vand.u32 %v2281, 4294901760
        %v2409 = vsub.f32 %v2281, %v2408
        %v2410 = vand.u32 %v2409, 4294901760
        %v2411 = vsub.f32 %v2409, %v2410
        %v2412 = vand.u32 %v2411, 4294901760
        %2413 = vmatpush.msra.mxu0 %v2412
        %v2414 = vand.u32 %v2290, 4294901760
        %2415 = vmatmul.f32.gmra.mxu0 %v2414
        %v2416 = vpop.f32.mrf.mxu0
        %v2417 = vadd.f32 %v2332, %v2416
        %v2418 = vand.u32 %v2293, 4294901760
        %2419 = vmatmul.f32.gmra.mxu0 %v2418
        %v2420 = vpop.f32.mrf.mxu0
        %v2421 = vadd.f32 %v2340, %v2420
        %v2422 = vand.u32 %v2296, 4294901760
        %2423 = vmatmul.f32.gmra.mxu0 %v2422
        %v2424 = vpop.f32.mrf.mxu0
        %v2425 = vadd.f32 %v2348, %v2424
        %v2426 = vand.u32 %v2299, 4294901760
        %2427 = vmatmul.f32.gmra.mxu0 %v2426
        %v2428 = vpop.f32.mrf.mxu0
        %v2429 = vadd.f32 %v2356, %v2428
        %2430 = vdwg.mxu0
        %2431 = vmatpush.msra.mxu0 0.0
        %2432 = vmatpush.msra.mxu0 0.0
        %2433 = vmatpush.msra.mxu0 0.0
        %2434 = vmatpush.msra.mxu0 0.0
        %2435 = vmatpush.msra.mxu0 0.0
        %2436 = vmatpush.msra.mxu0 0.0
        %2437 = vmatpush.msra.mxu0 0.0
        %2438 = vmatpush.msra.mxu0 0.0
        %v2439 = vand.u32 %v2288, 4294901760
        %v2440 = vsub.f32 %v2288, %v2439
        %2441 = vmatpush.msra.mxu0 %v2440
        %v2442 = vand.u32 %v2287, 4294901760
        %v2443 = vsub.f32 %v2287, %v2442
        %2444 = vmatpush.msra.mxu0 %v2443
        %v2445 = vand.u32 %v2286, 4294901760
        %v2446 = vsub.f32 %v2286, %v2445
        %2447 = vmatpush.msra.mxu0 %v2446
        %v2448 = vand.u32 %v2285, 4294901760
        %v2449 = vsub.f32 %v2285, %v2448
        %2450 = vmatpush.msra.mxu0 %v2449
        %v2451 = vand.u32 %v2284, 4294901760
        %v2452 = vsub.f32 %v2284, %v2451
        %2453 = vmatpush.msra.mxu0 %v2452
        %v2454 = vand.u32 %v2283, 4294901760
        %v2455 = vsub.f32 %v2283, %v2454
        %2456 = vmatpush.msra.mxu0 %v2455
        %v2457 = vand.u32 %v2282, 4294901760
        %v2458 = vsub.f32 %v2282, %v2457
        %2459 = vmatpush.msra.mxu0 %v2458
        %v2460 = vand.u32 %v2281, 4294901760
        %v2461 = vsub.f32 %v2281, %v2460
        %2462 = vmatpush.msra.mxu0 %v2461
        %v2463 = vand.u32 %v2290, 4294901760
        %v2464 = vsub.f32 %v2290, %v2463
        %2465 = vmatmul.f32.gmra.mxu0 %v2464
        %v2466 = vpop.f32.mrf.mxu0
        %v2467 = vadd.f32 %v2417, %v2466
        %v2468 = vand.u32 %v2293, 4294901760
        %v2469 = vsub.f32 %v2293, %v2468
        %2470 = vmatmul.f32.gmra.mxu0 %v2469
        %v2471 = vpop.f32.mrf.mxu0
        %v2472 = vadd.f32 %v2421, %v2471
        %v2473 = vand.u32 %v2296, 4294901760
        %v2474 = vsub.f32 %v2296, %v2473
        %2475 = vmatmul.f32.gmra.mxu0 %v2474
        %v2476 = vpop.f32.mrf.mxu0
        %v2477 = vadd.f32 %v2425, %v2476
        %v2478 = vand.u32 %v2299, 4294901760
        %v2479 = vsub.f32 %v2299, %v2478
        %2480 = vmatmul.f32.gmra.mxu0 %v2479
        %v2481 = vpop.f32.mrf.mxu0
        %v2482 = vadd.f32 %v2429, %v2481
        %2483 = vdwg.mxu0
        %2484 = vmatpush.msra.mxu0 0.0
        %2485 = vmatpush.msra.mxu0 0.0
        %2486 = vmatpush.msra.mxu0 0.0
        %2487 = vmatpush.msra.mxu0 0.0
        %2488 = vmatpush.msra.mxu0 0.0
        %2489 = vmatpush.msra.mxu0 0.0
        %2490 = vmatpush.msra.mxu0 0.0
        %2491 = vmatpush.msra.mxu0 0.0
        %v2492 = vand.u32 %v2288, 4294901760
        %2493 = vmatpush.msra.mxu0 %v2492
        %v2494 = vand.u32 %v2287, 4294901760
        %2495 = vmatpush.msra.mxu0 %v2494
        %v2496 = vand.u32 %v2286, 4294901760
        %2497 = vmatpush.msra.mxu0 %v2496
        %v2498 = vand.u32 %v2285, 4294901760
        %2499 = vmatpush.msra.mxu0 %v2498
        %v2500 = vand.u32 %v2284, 4294901760
        %2501 = vmatpush.msra.mxu0 %v2500
        %v2502 = vand.u32 %v2283, 4294901760
        %2503 = vmatpush.msra.mxu0 %v2502
        %v2504 = vand.u32 %v2282, 4294901760
        %2505 = vmatpush.msra.mxu0 %v2504
        %v2506 = vand.u32 %v2281, 4294901760
        %2507 = vmatpush.msra.mxu0 %v2506
        %v2508 = vand.u32 %v2290, 4294901760
        %v2509 = vsub.f32 %v2290, %v2508
        %v2510 = vand.u32 %v2509, 4294901760
        %2511 = vmatmul.f32.gmra.mxu0 %v2510
        %v2512 = vpop.f32.mrf.mxu0
        %v2513 = vadd.f32 %v2467, %v2512
        %v2514 = vand.u32 %v2293, 4294901760
        %v2515 = vsub.f32 %v2293, %v2514
        %v2516 = vand.u32 %v2515, 4294901760
        %2517 = vmatmul.f32.gmra.mxu0 %v2516
        %v2518 = vpop.f32.mrf.mxu0
        %v2519 = vadd.f32 %v2472, %v2518
        %v2520 = vand.u32 %v2296, 4294901760
        %v2521 = vsub.f32 %v2296, %v2520
        %v2522 = vand.u32 %v2521, 4294901760
        %2523 = vmatmul.f32.gmra.mxu0 %v2522
        %v2524 = vpop.f32.mrf.mxu0
        %v2525 = vadd.f32 %v2477, %v2524
        %v2526 = vand.u32 %v2299, 4294901760
        %v2527 = vsub.f32 %v2299, %v2526
        %v2528 = vand.u32 %v2527, 4294901760
        %2529 = vmatmul.f32.gmra.mxu0 %v2528
        %v2530 = vpop.f32.mrf.mxu0
        %v2531 = vadd.f32 %v2482, %v2530
        %2532 = vdwg.mxu0
        %2533 = vmatpush.msra.mxu0 0.0
        %2534 = vmatpush.msra.mxu0 0.0
        %2535 = vmatpush.msra.mxu0 0.0
        %2536 = vmatpush.msra.mxu0 0.0
        %2537 = vmatpush.msra.mxu0 0.0
        %2538 = vmatpush.msra.mxu0 0.0
        %2539 = vmatpush.msra.mxu0 0.0
        %2540 = vmatpush.msra.mxu0 0.0
        %v2541 = vand.u32 %v2288, 4294901760
        %v2542 = vsub.f32 %v2288, %v2541
        %v2543 = vand.u32 %v2542, 4294901760
        %2544 = vmatpush.msra.mxu0 %v2543
        %v2545 = vand.u32 %v2287, 4294901760
        %v2546 = vsub.f32 %v2287, %v2545
        %v2547 = vand.u32 %v2546, 4294901760
        %2548 = vmatpush.msra.mxu0 %v2547
        %v2549 = vand.u32 %v2286, 4294901760
        %v2550 = vsub.f32 %v2286, %v2549
        %v2551 = vand.u32 %v2550, 4294901760
        %2552 = vmatpush.msra.mxu0 %v2551
        %v2553 = vand.u32 %v2285, 4294901760
        %v2554 = vsub.f32 %v2285, %v2553
        %v2555 = vand.u32 %v2554, 4294901760
        %2556 = vmatpush.msra.mxu0 %v2555
        %v2557 = vand.u32 %v2284, 4294901760
        %v2558 = vsub.f32 %v2284, %v2557
        %v2559 = vand.u32 %v2558, 4294901760
        %2560 = vmatpush.msra.mxu0 %v2559
        %v2561 = vand.u32 %v2283, 4294901760
        %v2562 = vsub.f32 %v2283, %v2561
        %v2563 = vand.u32 %v2562, 4294901760
        %2564 = vmatpush.msra.mxu0 %v2563
        %v2565 = vand.u32 %v2282, 4294901760
        %v2566 = vsub.f32 %v2282, %v2565
        %v2567 = vand.u32 %v2566, 4294901760
        %2568 = vmatpush.msra.mxu0 %v2567
        %v2569 = vand.u32 %v2281, 4294901760
        %v2570 = vsub.f32 %v2281, %v2569
        %v2571 = vand.u32 %v2570, 4294901760
        %2572 = vmatpush.msra.mxu0 %v2571
        %v2573 = vand.u32 %v2290, 4294901760
        %2574 = vmatmul.f32.gmra.mxu0 %v2573
        %v2575 = vpop.f32.mrf.mxu0
        %v2576 = vadd.f32 %v2513, %v2575
        %v2577 = vand.u32 %v2293, 4294901760
        %2578 = vmatmul.f32.gmra.mxu0 %v2577
        %v2579 = vpop.f32.mrf.mxu0
        %v2580 = vadd.f32 %v2519, %v2579
        %v2581 = vand.u32 %v2296, 4294901760
        %2582 = vmatmul.f32.gmra.mxu0 %v2581
        %v2583 = vpop.f32.mrf.mxu0
        %v2584 = vadd.f32 %v2525, %v2583
        %v2585 = vand.u32 %v2299, 4294901760
        %2586 = vmatmul.f32.gmra.mxu0 %v2585
        %v2587 = vpop.f32.mrf.mxu0
        %v2588 = vadd.f32 %v2531, %v2587
        %2589 = vdwg.mxu0
        %2590 = vmatpush.msra.mxu0 0.0
        %2591 = vmatpush.msra.mxu0 0.0
        %2592 = vmatpush.msra.mxu0 0.0
        %2593 = vmatpush.msra.mxu0 0.0
        %2594 = vmatpush.msra.mxu0 0.0
        %2595 = vmatpush.msra.mxu0 0.0
        %2596 = vmatpush.msra.mxu0 0.0
        %2597 = vmatpush.msra.mxu0 0.0
        %v2598 = vand.u32 %v2288, 4294901760
        %2599 = vmatpush.msra.mxu0 %v2598
        %v2600 = vand.u32 %v2287, 4294901760
        %2601 = vmatpush.msra.mxu0 %v2600
        %v2602 = vand.u32 %v2286, 4294901760
        %2603 = vmatpush.msra.mxu0 %v2602
        %v2604 = vand.u32 %v2285, 4294901760
        %2605 = vmatpush.msra.mxu0 %v2604
        %v2606 = vand.u32 %v2284, 4294901760
        %2607 = vmatpush.msra.mxu0 %v2606
        %v2608 = vand.u32 %v2283, 4294901760
        %2609 = vmatpush.msra.mxu0 %v2608
        %v2610 = vand.u32 %v2282, 4294901760
        %2611 = vmatpush.msra.mxu0 %v2610
        %v2612 = vand.u32 %v2281, 4294901760
        %2613 = vmatpush.msra.mxu0 %v2612
        %v2614 = vand.u32 %v2290, 4294901760
        %2615 = vmatmul.f32.gmra.mxu0 %v2614
        %v2616 = vpop.f32.mrf.mxu0
        %v2617 = vadd.f32 %v2576, %v2616
        %v2618 = vand.u32 %v2293, 4294901760
        %2619 = vmatmul.f32.gmra.mxu0 %v2618
        %v2620 = vpop.f32.mrf.mxu0
        %v2621 = vadd.f32 %v2580, %v2620
        %v2622 = vand.u32 %v2296, 4294901760
        %2623 = vmatmul.f32.gmra.mxu0 %v2622
        %v2624 = vpop.f32.mrf.mxu0
        %v2625 = vadd.f32 %v2584, %v2624
        %v2626 = vand.u32 %v2299, 4294901760
        %2627 = vmatmul.f32.gmra.mxu0 %v2626
        %v2628 = vpop.f32.mrf.mxu0
        %v2629 = vadd.f32 %v2588, %v2628
        %2630 = vdwg.mxu0
        %v2631 = vld [vmem:[%s7] sm:$0x1]
        %v2633 = vperm.slane %v2631, 0
        %v2635 = vadd.f32 %v2617, %v2633
        %v2636 = vadd.f32 %v2621, %v2633
        %v2637 = vadd.f32 %v2625, %v2633
        %v2638 = vadd.f32 %v2629, %v2633
        %v2639 = vmul.f32 %v474, 0.70710677
        %v2640 = vmul.f32 %v475, 0.70710677
        %v2641 = vmul.f32 %v476, 0.70710677
        %v2642 = vmul.f32 %v477, 0.70710677
        %v2643 = vadd.f32 %v2635, %v2639
        %v2644 = vadd.f32 %v2636, %v2640
        %v2645 = vadd.f32 %v2637, %v2641
        %v2646 = vadd.f32 %v2638, %v2642
        %2647 = vst.msk [vmem:[%s424] sm:$0xff] %vm486, %v2643
        %2648 = vst.msk [vmem:[%s424 + $0x8] sm:$0xff] %vm486, %v2644
        %2649 = vst.msk [vmem:[%s424 + $0x10] sm:$0xff] %vm486, %v2645
        %2650 = vst.msk [vmem:[%s424 + $0x18] sm:$0xff] %vm486, %v2646
        %s2651 = sand.u32 %s241, 1
        %s2652 = scalar_lea.sflag [#allocation3], %s2651
        %s2653 = sand.u32 %s241, 1
        %s2654 = smul.addr %s2653, 32
        %s2655 = scalar_lea.vmem [#allocation2], %s2654
        %s2656 = sand.u32 %s269, 1
        %s2657 = scalar_lea.sflag [#allocation5], %s2656
        %s2658 = sand.u32 %s269, 1
        %s2659 = smul.addr %s2658, 32
        %s2660 = scalar_lea.vmem [#allocation4], %s2659
        // Predicated region
        $region53: #{tpu_custom_call.1} parent=51 // pred_check
          %p2661 = pneg %p251
        $region54: #{tpu_custom_call.1} parent=51 // pred_check_branch
          %2663 = sbr.rel (%p2661) target = $region56
        $region55: #{tpu_custom_call.1} parent=51 // pred_region
          %s2664 = smul.u32 2, %s31
          %s2665 = smul.u32 2, %s32
          %2667 = vsyncadd %s2652, 0
          %s2668 = smul.addr %s2664, 2
          %s2669 = sadd.s32 %s2665, %s2668
          %s2670 = smul.addr %s2669, 8
          %s2671 = scalar_lea.hbm %s8, %s2670
          %s2672 = sshll.u32 %s2655, 4
          %s2673 = int_to_ptr.vmem [resolvable:$true] %s2672
          %s2674 = sshll.u32 %s2671, 4
          %s2675 = int_to_ptr.hbm [resolvable:$true] %s2674
          %2680 = dma.vmem_to_hbm [thread:$0]  %s2673, 512, %s2675, %s2652, 128, 128, 8
        $region56: #{tpu_custom_call.1} parent=51 // pred_fallthru
          _
        // Predicated region
        $region57: #{tpu_custom_call.1} parent=51 // pred_check
          %p2681 = pneg %p279
        $region58: #{tpu_custom_call.1} parent=51 // pred_check_branch
          %2683 = sbr.rel (%p2681) target = $region60
        $region59: #{tpu_custom_call.1} parent=51 // pred_region
          %s2684 = smul.u32 2, %s31
          %s2685 = smul.u32 2, %s32
          %2687 = vsyncadd %s2657, 0
          %s2688 = smul.addr %s2684, 2
          %s2689 = sadd.s32 %s2685, %s2688
          %s2690 = smul.addr %s2689, 8
          %s2691 = scalar_lea.hbm %s9, %s2690
          %s2692 = sshll.u32 %s2660, 4
          %s2693 = int_to_ptr.vmem [resolvable:$true] %s2692
          %s2694 = sshll.u32 %s2691, 4
          %s2695 = int_to_ptr.hbm [resolvable:$true] %s2694
          %2700 = dma.vmem_to_hbm [thread:$0]  %s2693, 512, %s2695, %s2657, 128, 128, 8
        $region60: #{tpu_custom_call.1} parent=51 // pred_fallthru
          _
      $region52: #{tpu_custom_call.1} parent=5 // pred_fallthru
        _
      %p2701 = scmp.le.s32.totalorder 2, %s22
      // Predicated region
      $region61: #{tpu_custom_call.1} parent=5 // pred_check
        %p2702 = pneg %p2701
      $region62: #{tpu_custom_call.1} parent=5 // pred_check_branch
        %2704 = sbr.rel (%p2702) target = $region64
      $region63: #{tpu_custom_call.1} parent=5 // pred_region
        %s2705 = ssub.s32 %s22, 2
        // Predicated region
        $region65: #{tpu_custom_call.1} parent=63 // pred_check
          %p2706 = pneg %p257
        $region66: #{tpu_custom_call.1} parent=63 // pred_check_branch
          %2708 = sbr.rel (%p2706) target = $region68
        $region67: #{tpu_custom_call.1} parent=63 // pred_region
          %s2709 = sand.u32 %s242, 1
          %s2710 = scalar_lea.sflag [#allocation3], %s2709
          %s2711 = sand.u32 %s242, 1
          %s2712 = smul.addr %s2711, 32
          %s2713 = scalar_lea.vmem [#allocation2], %s2712
          %2715 = dma.done %s2710, 512
        $region68: #{tpu_custom_call.1} parent=63 // pred_fallthru
          _
        // Predicated region
        $region69: #{tpu_custom_call.1} parent=63 // pred_check
          %p2716 = pneg %p285
        $region70: #{tpu_custom_call.1} parent=63 // pred_check_branch
          %2718 = sbr.rel (%p2716) target = $region72
        $region71: #{tpu_custom_call.1} parent=63 // pred_region
          %s2719 = sand.u32 %s270, 1
          %s2720 = scalar_lea.sflag [#allocation5], %s2719
          %s2721 = sand.u32 %s270, 1
          %s2722 = smul.addr %s2721, 32
          %s2723 = scalar_lea.vmem [#allocation4], %s2722
          %2725 = dma.done %s2720, 512
        $region72: #{tpu_custom_call.1} parent=63 // pred_fallthru
          _
      $region64: #{tpu_custom_call.1} parent=5 // pred_fallthru
        _
    $region6: #{tpu_custom_call.1} parent=1 // loop_footer
      %s26 = sadd.s32 1, %s22
    $region7: #{tpu_custom_call.1} parent=1 // loop_footer_branch
      %21 = sbr.rel target = $region3
    $region8: #{tpu_custom_call.1} parent=1 // loop_exit
      _
    %2726 = vsyncpa [#allocation3], 1
    %s2727 = scalar_lea.sflag [#allocation3], 1
    %2728 = vsyncpa %s2727, 1
    %2729 = vsyncpa [#allocation5], 1
    %s2730 = scalar_lea.sflag [#allocation5], 1
    %2731 = vsyncpa %s2730, 1

</llo_original>
